<compile_context>
chip_gen: v5e
topology: v5e:2x2
jax: 0.10.0
libtpu: 0.0.40
codegen_flags: <defaults>
</compile_context>

<pallas_src>
import numpy as np
import jax
import jax.numpy as jnp
from jax import lax
from jax.experimental import pallas as pl
from jax.experimental.pallas import tpu as pltpu


# ----------------------------- static mu / sigma -----------------------------
def kernel_mus(n_kernels: int):
    l_mu = [1.0]
    if n_kernels == 1:
        return l_mu
    bin_size = 2.0 / (n_kernels - 1)
    l_mu.append(1 - bin_size / 2)
    for i in range(1, n_kernels - 1):
        l_mu.append(l_mu[i] - bin_size)
    return l_mu


def kernel_sigmas(n_kernels: int):
    l_sigma = [0.001]
    if n_kernels == 1:
        return l_sigma
    bin_size = 2.0 / (n_kernels - 1)
    l_sigma += [0.5 * bin_size] * (n_kernels - 1)
    return l_sigma


# --------------------------------- kernel ------------------------------------
def _make_kernel(NG, K, Lq, Ld, C, E, BT):
    ROWS = Lq + Ld  # multiple of 8 (wrapper pads Lq, Ld to sublane multiples)

    def kernel(qd_ref, qpad_ref, dpad_ref, w_ref, b_ref,
               mu_ref, nis_ref, sel_ref, wfull_ref, out_ref):
        # ---- ONE fused n-gram conv matmul for the whole BT block (bf16 MXU) ----
        x_all = qd_ref[...].reshape(BT * ROWS, NG * E)            # layout-preserving
        conv = jnp.maximum(
            jnp.dot(x_all, w_ref[...], preferred_element_type=jnp.float32)
            + b_ref[...],
            0.0)                                                  # (BT*ROWS, NG*C) f32
        conv = conv.reshape(BT, ROWS, NG * C)                     # layout-preserving

        # ---- stacked n-gram layout, built once per grid step --------------------
        q_stack = jnp.concatenate(
            [conv[:, :Lq, n * C:(n + 1) * C] for n in range(NG)], axis=1)  # (BT, NG*Lq, C)
        d_stack = jnp.concatenate(
            [conv[:, Lq:, n * C:(n + 1) * C] for n in range(NG)], axis=1)  # (BT, NG*Ld, C)

        # ---- L2 row-normalize (matches x / (||x|| + 1e-13)) ---------------------
        q_inv = 1.0 / (jnp.sqrt(jnp.sum(q_stack * q_stack, -1, keepdims=True)) + 1e-13)
        d_inv = 1.0 / (jnp.sqrt(jnp.sum(d_stack * d_stack, -1, keepdims=True)) + 1e-13)
        qn = q_stack * q_inv
        dn = d_stack * d_inv

        # ---- all NG*NG cosine matrices for all BT elements: one batched dot -----
        # (kept f32: the exact-match kernel sigma=1e-3 is too sharp for bf16 here)
        cos = lax.dot_general(qn, dn, (((2,), (2,)), ((0,), (0,))),
                              preferred_element_type=jnp.float32)  # (BT, NG*Lq, NG*Ld)

        # padded-document sentinel: exp underflows to exactly 0 there, so no
        # post-exp dpad mask is needed; padded-q rows are zeroed after the log.
        cosm = jnp.where(dpad_ref[...] > 0.0, cos, -1e4)

        # ---- vectorized Gaussian kernel pooling ---------------------------------
        cosm2 = cosm.reshape(BT * NG * Lq, NG * Ld)               # layout-preserving
        cos_rep = jnp.concatenate([cosm2] * K, axis=1)            # (BT*NG*Lq, K*NG*Ld)
        diff = cos_rep - mu_ref[...]
        rk = jnp.exp(diff * diff * nis_ref[...])                  # f32 elementwise

        # per-(kernel, d-gram-block) document sums via one selector matmul (bf16)
        pkq = jnp.dot(rk.astype(jnp.bfloat16), sel_ref[...],
                      preferred_element_type=jnp.float32)         # (BT*NG*Lq, K*NG)
        lp = jnp.log(jnp.maximum(pkq, 1e-10)).reshape(BT, NG * Lq, K * NG)

        # ---- dense layer: 0.01 log-scale + dense weights folded into wfull ------
        contrib = lp * qpad_ref[...] * wfull_ref[...]             # (BT, NG*Lq, K*NG)
        scores = jnp.sum(jnp.sum(contrib, axis=2, keepdims=True),
                         axis=1, keepdims=True)                   # (BT, 1, 1)
        out_ref[...] = jnp.broadcast_to(scores, (BT, 8, 128))

    return kernel


# -------------------------------- wrapper ------------------------------------
def conv_knrm_forward(q_tokens, d_tokens, emb_table, conv_weights, conv_biases,
                      dense_w, n_grams, n_kernels, block_batch=None):
    B, Lq0 = q_tokens.shape
    _, Ld0 = d_tokens.shape
    E = emb_table.shape[1]
    C = conv_weights[0].shape[0]
    NG, K = n_grams, n_kernels
    P = NG - 1

    # pad sequence lengths to sublane multiples (8); padded tokens are id 0 and
    # therefore fully masked out -> semantics unchanged.
    Lq = ((Lq0 + 7) // 8) * 8
    Ld = ((Ld0 + 7) // 8) * 8
    if Lq != Lq0:
        q_tokens = jnp.pad(q_tokens, ((0, 0), (0, Lq - Lq0)))
    if Ld != Ld0:
        d_tokens = jnp.pad(d_tokens, ((0, 0), (0, Ld - Ld0)))

    # masks (2-D token-id path of the PyTorch forward)
    q_oov = (q_tokens > 1).astype(jnp.float32)
    d_oov = (d_tokens > 1).astype(jnp.float32)
    q_pad = (q_tokens > 0).astype(jnp.float32)
    d_pad = (d_tokens > 0).astype(jnp.float32)

    # embedding gather + oov masking (host-side glue)
    q_emb = emb_table[q_tokens] * q_oov[..., None]                # (B, Lq, E)
    d_emb = emb_table[d_tokens] * d_oov[..., None]                # (B, Ld, E)

    # right-pad seq dim by NG-1 zeros (covers ConstantPad1d((0, i-1), 0) for all i)
    q_emb_p = jnp.pad(q_emb, ((0, 0), (0, P), (0, 0)))
    d_emb_p = jnp.pad(d_emb, ((0, 0), (0, P), (0, 0)))

    # shifted-window layout: column block k holds x_pad[l+k, :]; bf16 input stream
    q_win = jnp.concatenate([q_emb_p[:, k:k + Lq, :] for k in range(NG)], axis=-1)
    d_win = jnp.concatenate([d_emb_p[:, k:k + Ld, :] for k in range(NG)], axis=-1)
    qd_win = jnp.concatenate([q_win, d_win], axis=1).astype(jnp.bfloat16)  # (B, Lq+Ld, NG*E)

    # stacked pad masks matching the stacked n-gram activation layout
    qpad_s = jnp.tile(q_pad, (1, NG))[..., None]                  # (B, NG*Lq, 1)
    dpad_s = jnp.tile(d_pad, (1, NG))[:, None, :]                 # (B, 1, NG*Ld)

    # fused conv weight: column block n uses taps k<n, rows k>=n are zero (bf16)
    W_all_np = np.zeros((NG * E, NG * C), np.float32)
    for n in range(1, NG + 1):
        w = np.asarray(conv_weights[n - 1])                       # (C, E, n)
        wp = np.transpose(w, (2, 1, 0)).reshape(n * E, C)         # row k*E+e = w[c,e,k]
        W_all_np[:n * E, (n - 1) * C:n * C] = wp
    W_all = jnp.asarray(W_all_np, dtype=jnp.bfloat16)
    b_all = jnp.concatenate([jnp.reshape(b, (1, C)) for b in conv_biases],
                            axis=1).astype(jnp.float32)           # (1, NG*C)

    mus = np.array(kernel_mus(K), np.float32)
    sigs = np.array(kernel_sigmas(K), np.float32)
    mu_row = jnp.asarray(np.repeat(mus, NG * Ld).reshape(1, K * NG * Ld))
    nis_row = jnp.asarray(np.repeat(-1.0 / (2.0 * sigs * sigs), NG * Ld)
                          .reshape(1, K * NG * Ld))

    # selector: column (k*NG + t) sums lanes [k*NG*Ld + t*Ld : ... + Ld] (bf16 0/1)
    sel_np = np.zeros((K * NG * Ld, K * NG), np.float32)
    for k in range(K):
        for t in range(NG):
            sel_np[k * NG * Ld + t * Ld: k * NG * Ld + (t + 1) * Ld, k * NG + t] = 1.0
    sel = jnp.asarray(sel_np, dtype=jnp.bfloat16)

    # rearranged dense weights with the 0.01 log-scale folded in
    dw = np.asarray(dense_w).reshape(NG * NG * K)
    wfull_np = np.zeros((NG * Lq, K * NG), np.float32)
    for i in range(NG):
        for t in range(NG):
            for k in range(K):
                wfull_np[i * Lq:(i + 1) * Lq, k * NG + t] = 0.01 * dw[(i * NG + t) * K + k]
    wfull = jnp.asarray(wfull_np)

    # block batch: at least 2 grid steps (v7x dual-TensorCore sharding of the
    # "parallel" batch axis), capped at 16 to amortize per-step overhead.
    if block_batch is not None:
        BT = int(block_batch)
    else:
        BT = max(1, min(16, (B + 1) // 2))
    B_pad = ((B + BT - 1) // BT) * BT
    if B_pad != B:
        pb = B_pad - B
        qd_win = jnp.pad(qd_win, ((0, pb), (0, 0), (0, 0)))
        qpad_s = jnp.pad(qpad_s, ((0, pb), (0, 0), (0, 0)))
        dpad_s = jnp.pad(dpad_s, ((0, pb), (0, 0), (0, 0)))

    kern = _make_kernel(NG, K, Lq, Ld, C, E, BT)

    out = pl.pallas_call(
        kern,
        out_shape=jax.ShapeDtypeStruct((B_pad, 8, 128), jnp.float32),
        grid=(B_pad // BT,),
        in_specs=[
            pl.BlockSpec((BT, Lq + Ld, NG * E), lambda b: (b, 0, 0)),
            pl.BlockSpec((BT, NG * Lq, 1), lambda b: (b, 0, 0)),
            pl.BlockSpec((BT, 1, NG * Ld), lambda b: (b, 0, 0)),
            pl.BlockSpec((NG * E, NG * C), lambda b: (0, 0)),
            pl.BlockSpec((1, NG * C), lambda b: (0, 0)),
            pl.BlockSpec((1, K * NG * Ld), lambda b: (0, 0)),
            pl.BlockSpec((1, K * NG * Ld), lambda b: (0, 0)),
            pl.BlockSpec((K * NG * Ld, K * NG), lambda b: (0, 0)),
            pl.BlockSpec((NG * Lq, K * NG), lambda b: (0, 0)),
        ],
        out_specs=pl.BlockSpec((BT, 8, 128), lambda b: (b, 0, 0)),
        compiler_params=pltpu.CompilerParams(dimension_semantics=("parallel",)),
    )(qd_win, qpad_s, dpad_s, W_all, b_all, mu_row, nis_row, sel, wfull)

    return out[:B, 0, 0]                                          # (B,)


# ----------------------------- pure-JAX reference ----------------------------
def reference_forward(q_tokens, d_tokens, emb_table, conv_ws, conv_bs, dense_w,
                      NG, K):
    q_oov = (q_tokens > 1).astype(jnp.float32)
    d_oov = (d_tokens > 1).astype(jnp.float32)
    q_pad = (q_tokens > 0).astype(jnp.float32)
    d_pad = (d_tokens > 0).astype(jnp.float32)
    q_emb = emb_table[q_tokens] * q_oov[..., None]
    d_emb = emb_table[d_tokens] * d_oov[..., None]
    qd_mask = q_pad[..., None] * d_pad[:, None, :]
    mus = jnp.array(kernel_mus(K), jnp.float32).reshape(1, 1, 1, K)
    sig = jnp.array(kernel_sigmas(K), jnp.float32).reshape(1, 1, 1, K)

    def conv(x, w, b, n):
        B, L, _ = x.shape
        xp = jnp.pad(x, ((0, 0), (0, n - 1), (0, 0)))
        out = jnp.zeros((B, L, w.shape[0]), jnp.float32) + b[None, None, :]
        for k in range(n):
            out = out + jnp.einsum('ble,ce->blc', xp[:, k:k + L, :], w[:, :, k])
        return jnp.maximum(out, 0.0)

    def normalize(x):
        return x / (jnp.linalg.norm(x, axis=-1, keepdims=True) + 1e-13)

    q_convs = [conv(q_emb, conv_ws[n - 1], conv_bs[n - 1], n) for n in range(1, NG + 1)]
    d_convs = [conv(d_emb, conv_ws[n - 1], conv_bs[n - 1], n) for n in range(1, NG + 1)]

    feats = []
    for i in range(NG):
        for t in range(NG):
            cos = jnp.einsum('bqc,bdc->bqd', normalize(q_convs[i]), normalize(d_convs[t]))
            cosm = cos * qd_mask
            rk = jnp.exp(-(cosm[..., None] - mus) ** 2 / (2 * sig ** 2)) * qd_mask[..., None]
            pkq = jnp.sum(rk, axis=2)
            lpkq = jnp.log(jnp.maximum(pkq, 1e-10)) * 0.01 * q_pad[..., None]
            feats.append(jnp.sum(lpkq, axis=1))
    all_grams = jnp.concatenate(feats, axis=1)
    return all_grams @ dense_w


# ---------------------------------- main --------------------------------------
if __name__ == "__main__":
    B, Lq, Ld = 2, 8, 16
    E, C = 32, 32            # embedding dim, conv_out_dim
    NG, K = 3, 11            # n_grams, n_kernels
    VOCAB = 30
    F = NG * NG * K

    key = jax.random.PRNGKey(0)
    keys = jax.random.split(key, 3 + 2 * NG)

    # tokens (0 = pad, 1 = oov)
    q_tokens = jnp.array([[5, 7, 3, 9, 1, 6, 0, 0],
                          [4, 2, 8, 6, 5, 3, 1, 0]], dtype=jnp.int32)
    d_tokens = jax.random.randint(keys[0], (B, Ld), 2, VOCAB, dtype=jnp.int32)
    d_tokens = d_tokens.at[0, 12:].set(0).at[1, 14:].set(0).at[0, 5].set(1)

    emb_table = (jax.random.normal(keys[1], (VOCAB, E), jnp.float32) * 0.1)

    conv_ws, conv_bs = [], []
    for n in range(1, NG + 1):
        conv_ws.append(jax.random.uniform(keys[1 + n], (C, E, n),
                                          jnp.float32, -0.1, 0.1))
        conv_bs.append(jax.random.uniform(keys[1 + NG + n], (C,),
                                          jnp.float32, -0.05, 0.05))
    dense_w = jax.random.uniform(keys[2], (F,), jnp.float32, -0.014, 0.014)

    out = conv_knrm_forward(q_tokens, d_tokens, emb_table, conv_ws, conv_bs,
                            dense_w, NG, K)
    out = jax.block_until_ready(out)

    ref = reference_forward(q_tokens, d_tokens, emb_table, conv_ws, conv_bs,
                            dense_w, NG, K)
    assert out.shape == (B,)
    # tolerance covers the bf16 MXU operands (conv + selector matmuls); the
    # cosine dot and all elementwise math stay f32.
    assert jnp.allclose(out, ref, atol=1e-3, rtol=5e-3), (out, ref)
    print("KERNEL_OK")
</pallas_src>

<mosaic_0001>
module attributes {stable_mosaic.version = 11 : i64} {
  func.func @kernel(%arg0: i32, %arg1: memref<1x24x96xbf16, #tpu.memory_space<vmem>>, %arg2: memref<1x24x1xf32, #tpu.memory_space<vmem>>, %arg3: memref<1x1x48xf32, #tpu.memory_space<vmem>>, %arg4: memref<96x96xbf16, #tpu.memory_space<vmem>>, %arg5: memref<1x96xf32, #tpu.memory_space<vmem>>, %arg6: memref<1x528xf32, #tpu.memory_space<vmem>>, %arg7: memref<1x528xf32, #tpu.memory_space<vmem>>, %arg8: memref<528x33xbf16, #tpu.memory_space<vmem>>, %arg9: memref<24x33xf32, #tpu.memory_space<vmem>>, %arg10: memref<1x8x128xf32, #tpu.memory_space<vmem>>) attributes {dimension_semantics = [#tpu.dimension_semantics<parallel>], iteration_bounds = array<i64: 2>, scalar_prefetch = 0 : i64, scratch_operands = 0 : i64, tpu.core_type = #tpu.core_type<tc>, window_params = [{transform_indices = @transform_0, window_bounds = array<i64: 1, 24, 96>}, {transform_indices = @transform_1, window_bounds = array<i64: 1, 24, 1>}, {transform_indices = @transform_2, window_bounds = array<i64: 1, 1, 48>}, {pipeline_mode = #tpu.pipeline_mode<synchronous>, transform_indices = @transform_3, window_bounds = array<i64: 96, 96>}, {pipeline_mode = #tpu.pipeline_mode<synchronous>, transform_indices = @transform_4, window_bounds = array<i64: 1, 96>}, {pipeline_mode = #tpu.pipeline_mode<synchronous>, transform_indices = @transform_5, window_bounds = array<i64: 1, 528>}, {pipeline_mode = #tpu.pipeline_mode<synchronous>, transform_indices = @transform_6, window_bounds = array<i64: 1, 528>}, {pipeline_mode = #tpu.pipeline_mode<synchronous>, transform_indices = @transform_7, window_bounds = array<i64: 528, 33>}, {pipeline_mode = #tpu.pipeline_mode<synchronous>, transform_indices = @transform_8, window_bounds = array<i64: 24, 33>}, {transform_indices = @transform_9, window_bounds = array<i64: 1, 8, 128>}]} {
    %c0 = arith.constant 0 : index
    %c0_0 = arith.constant 0 : index
    %c0_1 = arith.constant 0 : index
    %0 = vector.load %arg1[%c0, %c0_0, %c0_1] : memref<1x24x96xbf16, #tpu.memory_space<vmem>>, vector<1x24x96xbf16>
    %1 = vector.shape_cast %0 : vector<1x24x96xbf16> to vector<24x96xbf16>
    %c0_2 = arith.constant 0 : index
    %c0_3 = arith.constant 0 : index
    %2 = vector.load %arg4[%c0_2, %c0_3] : memref<96x96xbf16, #tpu.memory_space<vmem>>, vector<96x96xbf16>
    %cst = arith.constant dense<0.000000e+00> : vector<24x96xf32>
    %3 = tpu.matmul %1, %2, %cst {dimension_numbers = #tpu.dot_dimension_numbers<[1], [0], [0], [1], [0, 0, 1, 1], [], []>} : vector<24x96xbf16>, vector<96x96xbf16>, vector<24x96xf32> -> vector<24x96xf32>
    %c0_4 = arith.constant 0 : index
    %c0_5 = arith.constant 0 : index
    %4 = vector.load %arg5[%c0_4, %c0_5] : memref<1x96xf32, #tpu.memory_space<vmem>>, vector<1x96xf32>
    %5 = vector.broadcast %4 : vector<1x96xf32> to vector<24x96xf32>
    %6 = arith.addf %3, %5 : vector<24x96xf32>
    %cst_6 = arith.constant 0.000000e+00 : f32
    %7 = vector.broadcast %cst_6 : f32 to vector<24x96xf32>
    %8 = arith.maximumf %6, %7 : vector<24x96xf32>
    %9 = vector.shape_cast %8 : vector<24x96xf32> to vector<1x24x96xf32>
    %10 = vector.extract_strided_slice %9 {offsets = [0, 0, 0], sizes = [1, 8, 32], strides = [1, 1, 1]} : vector<1x24x96xf32> to vector<1x8x32xf32>
    %11 = vector.extract_strided_slice %9 {offsets = [0, 0, 32], sizes = [1, 8, 32], strides = [1, 1, 1]} : vector<1x24x96xf32> to vector<1x8x32xf32>
    %12 = vector.extract_strided_slice %9 {offsets = [0, 0, 64], sizes = [1, 8, 32], strides = [1, 1, 1]} : vector<1x24x96xf32> to vector<1x8x32xf32>
    %13 = tpu.concatenate %10, %11, %12 in 1 : vector<1x8x32xf32>, vector<1x8x32xf32>, vector<1x8x32xf32> -> vector<1x24x32xf32>
    %14 = vector.extract_strided_slice %9 {offsets = [0, 8, 0], sizes = [1, 16, 32], strides = [1, 1, 1]} : vector<1x24x96xf32> to vector<1x16x32xf32>
    %15 = vector.extract_strided_slice %9 {offsets = [0, 8, 32], sizes = [1, 16, 32], strides = [1, 1, 1]} : vector<1x24x96xf32> to vector<1x16x32xf32>
    %16 = vector.extract_strided_slice %9 {offsets = [0, 8, 64], sizes = [1, 16, 32], strides = [1, 1, 1]} : vector<1x24x96xf32> to vector<1x16x32xf32>
    %17 = tpu.concatenate %14, %15, %16 in 1 : vector<1x16x32xf32>, vector<1x16x32xf32>, vector<1x16x32xf32> -> vector<1x48x32xf32>
    %18 = arith.mulf %13, %13 : vector<1x24x32xf32>
    %cst_7 = arith.constant dense<0.000000e+00> : vector<1x24xf32>
    %19 = vector.multi_reduction <add>, %18, %cst_7 [2] : vector<1x24x32xf32> to vector<1x24xf32>
    %20 = vector.shape_cast %19 : vector<1x24xf32> to vector<1x24x1xf32>
    %21 = math.sqrt %20 : vector<1x24x1xf32>
    %cst_8 = arith.constant 9.99999982E-14 : f32
    %22 = vector.broadcast %cst_8 : f32 to vector<1x24x1xf32>
    %23 = arith.addf %21, %22 : vector<1x24x1xf32>
    %cst_9 = arith.constant 1.000000e+00 : f32
    %24 = vector.broadcast %cst_9 : f32 to vector<1x24x1xf32>
    %25 = arith.divf %24, %23 : vector<1x24x1xf32>
    %26 = arith.mulf %17, %17 : vector<1x48x32xf32>
    %cst_10 = arith.constant dense<0.000000e+00> : vector<1x48xf32>
    %27 = vector.multi_reduction <add>, %26, %cst_10 [2] : vector<1x48x32xf32> to vector<1x48xf32>
    %28 = vector.shape_cast %27 : vector<1x48xf32> to vector<1x48x1xf32>
    %29 = math.sqrt %28 : vector<1x48x1xf32>
    %cst_11 = arith.constant 9.99999982E-14 : f32
    %30 = vector.broadcast %cst_11 : f32 to vector<1x48x1xf32>
    %31 = arith.addf %29, %30 : vector<1x48x1xf32>
    %cst_12 = arith.constant 1.000000e+00 : f32
    %32 = vector.broadcast %cst_12 : f32 to vector<1x48x1xf32>
    %33 = arith.divf %32, %31 : vector<1x48x1xf32>
    %34 = vector.broadcast %25 : vector<1x24x1xf32> to vector<1x24x32xf32>
    %35 = arith.mulf %13, %34 : vector<1x24x32xf32>
    %36 = vector.broadcast %33 : vector<1x48x1xf32> to vector<1x48x32xf32>
    %37 = arith.mulf %17, %36 : vector<1x48x32xf32>
    %cst_13 = arith.constant dense<0.000000e+00> : vector<1x24x48xf32>
    %38 = tpu.matmul %35, %37, %cst_13 {dimension_numbers = #tpu.dot_dimension_numbers<[2], [2], [1], [1], [0, 0, 0, 1, 1, 1], [0], [0]>} : vector<1x24x32xf32>, vector<1x48x32xf32>, vector<1x24x48xf32> -> vector<1x24x48xf32>
    %c0_14 = arith.constant 0 : index
    %c0_15 = arith.constant 0 : index
    %c0_16 = arith.constant 0 : index
    %39 = vector.load %arg3[%c0_14, %c0_15, %c0_16] : memref<1x1x48xf32, #tpu.memory_space<vmem>>, vector<1x1x48xf32>
    %cst_17 = arith.constant 0.000000e+00 : f32
    %40 = vector.broadcast %cst_17 : f32 to vector<1x1x48xf32>
    %41 = arith.cmpf ogt, %39, %40 : vector<1x1x48xf32>
    %cst_18 = arith.constant -1.000000e+04 : f32
    %42 = vector.shape_cast %41 : vector<1x1x48xi1> to vector<1x1x48xi1>
    %43 = vector.broadcast %42 : vector<1x1x48xi1> to vector<1x24x48xi1>
    %44 = vector.broadcast %cst_18 : f32 to vector<1x24x48xf32>
    %45 = arith.select %43, %38, %44 : vector<1x24x48xi1>, vector<1x24x48xf32>
    %46 = vector.shape_cast %45 : vector<1x24x48xf32> to vector<24x48xf32>
    %47 = tpu.concatenate %46, %46, %46, %46, %46, %46, %46, %46, %46, %46, %46 in 1 : vector<24x48xf32>, vector<24x48xf32>, vector<24x48xf32>, vector<24x48xf32>, vector<24x48xf32>, vector<24x48xf32>, vector<24x48xf32>, vector<24x48xf32>, vector<24x48xf32>, vector<24x48xf32>, vector<24x48xf32> -> vector<24x528xf32>
    %c0_19 = arith.constant 0 : index
    %c0_20 = arith.constant 0 : index
    %48 = vector.load %arg6[%c0_19, %c0_20] : memref<1x528xf32, #tpu.memory_space<vmem>>, vector<1x528xf32>
    %49 = vector.broadcast %48 : vector<1x528xf32> to vector<24x528xf32>
    %50 = arith.subf %47, %49 : vector<24x528xf32>
    %51 = arith.mulf %50, %50 : vector<24x528xf32>
    %c0_21 = arith.constant 0 : index
    %c0_22 = arith.constant 0 : index
    %52 = vector.load %arg7[%c0_21, %c0_22] : memref<1x528xf32, #tpu.memory_space<vmem>>, vector<1x528xf32>
    %53 = vector.broadcast %52 : vector<1x528xf32> to vector<24x528xf32>
    %54 = arith.mulf %51, %53 : vector<24x528xf32>
    %55 = math.exp %54 : vector<24x528xf32>
    %56 = arith.truncf %55 : vector<24x528xf32> to vector<24x528xbf16>
    %c0_23 = arith.constant 0 : index
    %c0_24 = arith.constant 0 : index
    %57 = vector.load %arg8[%c0_23, %c0_24] : memref<528x33xbf16, #tpu.memory_space<vmem>>, vector<528x33xbf16>
    %cst_25 = arith.constant dense<0.000000e+00> : vector<24x33xf32>
    %58 = tpu.matmul %56, %57, %cst_25 {dimension_numbers = #tpu.dot_dimension_numbers<[1], [0], [0], [1], [0, 0, 1, 1], [], []>} : vector<24x528xbf16>, vector<528x33xbf16>, vector<24x33xf32> -> vector<24x33xf32>
    %cst_26 = arith.constant 1.000000e-10 : f32
    %59 = vector.broadcast %cst_26 : f32 to vector<24x33xf32>
    %60 = arith.maximumf %58, %59 : vector<24x33xf32>
    %61 = math.log %60 : vector<24x33xf32>
    %62 = vector.shape_cast %61 : vector<24x33xf32> to vector<1x24x33xf32>
    %c0_27 = arith.constant 0 : index
    %c0_28 = arith.constant 0 : index
    %c0_29 = arith.constant 0 : index
    %63 = vector.load %arg2[%c0_27, %c0_28, %c0_29] : memref<1x24x1xf32, #tpu.memory_space<vmem>>, vector<1x24x1xf32>
    %64 = vector.broadcast %63 : vector<1x24x1xf32> to vector<1x24x33xf32>
    %65 = arith.mulf %62, %64 : vector<1x24x33xf32>
    %c0_30 = arith.constant 0 : index
    %c0_31 = arith.constant 0 : index
    %66 = vector.load %arg9[%c0_30, %c0_31] : memref<24x33xf32, #tpu.memory_space<vmem>>, vector<24x33xf32>
    %67 = vector.shape_cast %66 : vector<24x33xf32> to vector<1x24x33xf32>
    %68 = arith.mulf %65, %67 : vector<1x24x33xf32>
    %cst_32 = arith.constant dense<0.000000e+00> : vector<1x24xf32>
    %69 = vector.multi_reduction <add>, %68, %cst_32 [2] : vector<1x24x33xf32> to vector<1x24xf32>
    %70 = vector.shape_cast %69 : vector<1x24xf32> to vector<1x24x1xf32>
    %cst_33 = arith.constant dense<0.000000e+00> : vector<1x1xf32>
    %71 = vector.multi_reduction <add>, %70, %cst_33 [1] : vector<1x24x1xf32> to vector<1x1xf32>
    %72 = vector.shape_cast %71 : vector<1x1xf32> to vector<1x1x1xf32>
    %73 = vector.shape_cast %72 : vector<1x1x1xf32> to vector<1x1x1xf32>
    %74 = vector.broadcast %73 : vector<1x1x1xf32> to vector<1x8x128xf32>
    %c0_34 = arith.constant 0 : index
    %c0_35 = arith.constant 0 : index
    %c0_36 = arith.constant 0 : index
    %75 = vector.load %arg10[%c0_34, %c0_35, %c0_36] : memref<1x8x128xf32, #tpu.memory_space<vmem>>, vector<1x8x128xf32>
    tpu.vector_store %arg10[%c0_34, %c0_35, %c0_36], %74 {strides = array<i32>} : memref<1x8x128xf32, #tpu.memory_space<vmem>>, vector<1x8x128xf32>,
    return
  }
  func.func @transform_0(%arg0: i32) -> (i32, i32, i32) {
    %c0_i32 = arith.constant 0 : i32
    %c0_i32_0 = arith.constant 0 : i32
    %c0_i32_1 = arith.constant 0 : i32
    return %arg0, %c0_i32, %c0_i32_0 : i32, i32, i32
  }
  func.func @transform_1(%arg0: i32) -> (i32, i32, i32) {
    %c0_i32 = arith.constant 0 : i32
    %c0_i32_0 = arith.constant 0 : i32
    %c0_i32_1 = arith.constant 0 : i32
    return %arg0, %c0_i32, %c0_i32_0 : i32, i32, i32
  }
  func.func @transform_2(%arg0: i32) -> (i32, i32, i32) {
    %c0_i32 = arith.constant 0 : i32
    %c0_i32_0 = arith.constant 0 : i32
    %c0_i32_1 = arith.constant 0 : i32
    return %arg0, %c0_i32, %c0_i32_0 : i32, i32, i32
  }
  func.func @transform_3(%arg0: i32) -> (i32, i32) {
    %c0_i32 = arith.constant 0 : i32
    %c0_i32_0 = arith.constant 0 : i32
    %c0_i32_1 = arith.constant 0 : i32
    return %c0_i32, %c0_i32_0 : i32, i32
  }
  func.func @transform_4(%arg0: i32) -> (i32, i32) {
    %c0_i32 = arith.constant 0 : i32
    %c0_i32_0 = arith.constant 0 : i32
    %c0_i32_1 = arith.constant 0 : i32
    return %c0_i32, %c0_i32_0 : i32, i32
  }
  func.func @transform_5(%arg0: i32) -> (i32, i32) {
    %c0_i32 = arith.constant 0 : i32
    %c0_i32_0 = arith.constant 0 : i32
    %c0_i32_1 = arith.constant 0 : i32
    return %c0_i32, %c0_i32_0 : i32, i32
  }
  func.func @transform_6(%arg0: i32) -> (i32, i32) {
    %c0_i32 = arith.constant 0 : i32
    %c0_i32_0 = arith.constant 0 : i32
    %c0_i32_1 = arith.constant 0 : i32
    return %c0_i32, %c0_i32_0 : i32, i32
  }
  func.func @transform_7(%arg0: i32) -> (i32, i32) {
    %c0_i32 = arith.constant 0 : i32
    %c0_i32_0 = arith.constant 0 : i32
    %c0_i32_1 = arith.constant 0 : i32
    return %c0_i32, %c0_i32_0 : i32, i32
  }
  func.func @transform_8(%arg0: i32) -> (i32, i32) {
    %c0_i32 = arith.constant 0 : i32
    %c0_i32_0 = arith.constant 0 : i32
    %c0_i32_1 = arith.constant 0 : i32
    return %c0_i32, %c0_i32_0 : i32, i32
  }
  func.func @transform_9(%arg0: i32) -> (i32, i32, i32) {
    %c0_i32 = arith.constant 0 : i32
    %c0_i32_0 = arith.constant 0 : i32
    %c0_i32_1 = arith.constant 0 : i32
    return %arg0, %c0_i32, %c0_i32_0 : i32, i32, i32
  }
}

</mosaic_0001>

<llo_original>
// kernel: tpu_custom_call.1
$region0: #{tpu_custom_call.1}
  #allocation0 [shape = 'u32[]', space=smem, size = 0x4, offset = 0x4, fixed_abs, tag = 'smem constant byte address 0x4 - core index']
  #allocation1 [shape = 'u32[72,128]{1,0:T(1,128)}', space=vmem, size = 0x9000, scoped, tag = 'internal scratch']
  %s0 = inlined_call_operand.vmem [shape: bf16[2,24,96], index: 0, kind: input, shape index: {}]
  %s1 = inlined_call_operand.vmem [shape: f32[2,24,1], index: 1, kind: input, shape index: {}]
  %s2 = inlined_call_operand.vmem [shape: f32[2,1,48], index: 2, kind: input, shape index: {}]
  %s3 = inlined_call_operand.vmem [shape: bf16[96,96], index: 3, kind: input, shape index: {}]
  %s4 = inlined_call_operand.vmem [shape: f32[1,96], index: 4, kind: input, shape index: {}]
  %s5 = inlined_call_operand.vmem [shape: f32[1,528], index: 5, kind: input, shape index: {}]
  %s6 = inlined_call_operand.vmem [shape: f32[1,528], index: 6, kind: input, shape index: {}]
  %s7 = inlined_call_operand.vmem [shape: bf16[528,33], index: 7, kind: input, shape index: {}]
  %s8 = inlined_call_operand.vmem [shape: f32[24,33], index: 8, kind: input, shape index: {}]
  %s9 = inlined_call_operand.hbm [shape: f32[2,8,128], index: 9, kind: output, shape index: {}]
  %s10 = sld [smem:[#allocation0]]
  $region69: #{tpu_custom_call.1} parent=0
    _
  %s12 = ssub.s32 1, %s10
  %s13 = scalar_select 0, %s12, %s10
  $region1: #{tpu_custom_call.1} parent=0
    #allocation2 [shape = 'u8[8192]{0}', space=vmem, size = 0x2000, scoped, tag = 'output window, operand 0']
    #allocation3 [shape = 's32[2]{0}', space=sflag, size = 0x8, scoped, tag = 'scoped memory for tpu_custom_call.1']
    %14 = vsyncpa [#allocation3], 0
    %s15 = scalar_lea.sflag [#allocation3], 1
    %16 = vsyncpa %s15, 0
    loop: start=0, step=1, limit=4
    $region2: #{tpu_custom_call.1} parent=1 // loop_pre_header
      _
    $region3: #{tpu_custom_call.1} parent=1 // loop_header
      %s18 = sphi 0, %s22
      %p19 = scmp.ge.s32.totalorder %s18, 4
      %s28 = sphi 0, %s30
      %s31 = sphi 0, %s28
      %s32 = sphi 0, %s31
      %s48 = sphi 0, %s32
      %s54 = sphi 0, %s56
      %s57 = sphi 0, %s54
      %s58 = sphi 0, %s57
      %s74 = sphi 0, %s58
      %s80 = sphi 0, %s82
      %s83 = sphi 0, %s80
      %s84 = sphi 0, %s83
      %s100 = sphi 0, %s84
      %s104 = sphi 0, %s104
      %s106 = sphi 0, %s104
      %s107 = sphi 0, %s106
      %s121 = sphi 0, %s107
      %s125 = sphi 0, %s125
      %s127 = sphi 0, %s125
      %s128 = sphi 0, %s127
      %s142 = sphi 0, %s128
      %s146 = sphi 0, %s146
      %s148 = sphi 0, %s146
      %s149 = sphi 0, %s148
      %s163 = sphi 0, %s149
      %s167 = sphi 0, %s167
      %s169 = sphi 0, %s167
      %s170 = sphi 0, %s169
      %s184 = sphi 0, %s170
      %s188 = sphi 0, %s188
      %s190 = sphi 0, %s188
      %s191 = sphi 0, %s190
      %s205 = sphi 0, %s191
      %s209 = sphi 0, %s209
      %s211 = sphi 0, %s209
      %s212 = sphi 0, %s211
      %s226 = sphi 0, %s212
      %s232 = sphi 0, %s234
      %s235 = sphi 0, %s232
      %s236 = sphi 0, %s235
      %s252 = sphi 0, %s236
    $region4: #{tpu_custom_call.1} parent=1 // loop_header_branch
      %21 = sbr.rel (%p19) target = $region8
    $region5: #{tpu_custom_call.1} parent=1 // loop_body
      %s23 = ssub.s32 %s18, 1
      %s24 = ssub.s32 %s18, 2
      %s25 = sadd.s32 %s18, 1
      %s26 = ssub.s32 %s18, %s25
      %p27 = scmp.eq.s32.totalorder %s26, 0
      %s29 = sadd.s32 %s28, 1
      %s30 = scalar_select %p27, %s28, %s29
      %p33 = pneg %p27
      %p34 = scmp.eq.s32.totalorder %s18, 1
      %p35 = por %p33, %p34
      %p36 = scmp.ne.s32.totalorder %s28, %s31
      %p37 = scmp.eq.s32.totalorder %s18, 0
      %p38 = por %p36, %p37
      %p39 = scmp.ne.s32.totalorder %s28, %s31
      %p40 = scmp.eq.s32.totalorder %s23, 1
      %p41 = por %p39, %p40
      %p42 = scmp.ne.s32.totalorder %s31, %s32
      %p43 = scmp.eq.s32.totalorder %s23, 0
      %p44 = por %p42, %p43
      %p45 = scmp.ne.s32.totalorder %s31, %s32
      %p46 = scmp.eq.s32.totalorder %s24, 1
      %p47 = por %p45, %p46
      %p49 = scmp.ne.s32.totalorder %s32, %s48
      %p50 = scmp.eq.s32.totalorder %s24, 0
      %p51 = por %p49, %p50
      %s52 = ssub.s32 %s18, %s25
      %p53 = scmp.eq.s32.totalorder %s52, 0
      %s55 = sadd.s32 %s54, 1
      %s56 = scalar_select %p53, %s54, %s55
      %p59 = pneg %p53
      %p60 = scmp.eq.s32.totalorder %s18, 1
      %p61 = por %p59, %p60
      %p62 = scmp.ne.s32.totalorder %s54, %s57
      %p63 = scmp.eq.s32.totalorder %s18, 0
      %p64 = por %p62, %p63
      %p65 = scmp.ne.s32.totalorder %s54, %s57
      %p66 = scmp.eq.s32.totalorder %s23, 1
      %p67 = por %p65, %p66
      %p68 = scmp.ne.s32.totalorder %s57, %s58
      %p69 = scmp.eq.s32.totalorder %s23, 0
      %p70 = por %p68, %p69
      %p71 = scmp.ne.s32.totalorder %s57, %s58
      %p72 = scmp.eq.s32.totalorder %s24, 1
      %p73 = por %p71, %p72
      %p75 = scmp.ne.s32.totalorder %s58, %s74
      %p76 = scmp.eq.s32.totalorder %s24, 0
      %p77 = por %p75, %p76
      %s78 = ssub.s32 %s18, %s25
      %p79 = scmp.eq.s32.totalorder %s78, 0
      %s81 = sadd.s32 %s80, 1
      %s82 = scalar_select %p79, %s80, %s81
      %p85 = pneg %p79
      %p86 = scmp.eq.s32.totalorder %s18, 1
      %p87 = por %p85, %p86
      %p88 = scmp.ne.s32.totalorder %s80, %s83
      %p89 = scmp.eq.s32.totalorder %s18, 0
      %p90 = por %p88, %p89
      %p91 = scmp.ne.s32.totalorder %s80, %s83
      %p92 = scmp.eq.s32.totalorder %s23, 1
      %p93 = por %p91, %p92
      %p94 = scmp.ne.s32.totalorder %s83, %s84
      %p95 = scmp.eq.s32.totalorder %s23, 0
      %p96 = por %p94, %p95
      %p97 = scmp.ne.s32.totalorder %s83, %s84
      %p98 = scmp.eq.s32.totalorder %s24, 1
      %p99 = por %p97, %p98
      %p101 = scmp.ne.s32.totalorder %s84, %s100
      %p102 = scmp.eq.s32.totalorder %s24, 0
      %p103 = por %p101, %p102
      %s105 = sadd.s32 %s104, 1
      %p108 = scmp.eq.s32.totalorder %s18, 1
      %p109 = scmp.ne.s32.totalorder %s104, %s106
      %p110 = scmp.eq.s32.totalorder %s18, 0
      %p111 = por %p109, %p110
      %p112 = scmp.ne.s32.totalorder %s104, %s106
      %p113 = scmp.eq.s32.totalorder %s23, 1
      %p114 = por %p112, %p113
      %p115 = scmp.ne.s32.totalorder %s106, %s107
      %p116 = scmp.eq.s32.totalorder %s23, 0
      %p117 = por %p115, %p116
      %p118 = scmp.ne.s32.totalorder %s106, %s107
      %p119 = scmp.eq.s32.totalorder %s24, 1
      %p120 = por %p118, %p119
      %p122 = scmp.ne.s32.totalorder %s107, %s121
      %p123 = scmp.eq.s32.totalorder %s24, 0
      %p124 = por %p122, %p123
      %s126 = sadd.s32 %s125, 1
      %p129 = scmp.eq.s32.totalorder %s18, 1
      %p130 = scmp.ne.s32.totalorder %s125, %s127
      %p131 = scmp.eq.s32.totalorder %s18, 0
      %p132 = por %p130, %p131
      %p133 = scmp.ne.s32.totalorder %s125, %s127
      %p134 = scmp.eq.s32.totalorder %s23, 1
      %p135 = por %p133, %p134
      %p136 = scmp.ne.s32.totalorder %s127, %s128
      %p137 = scmp.eq.s32.totalorder %s23, 0
      %p138 = por %p136, %p137
      %p139 = scmp.ne.s32.totalorder %s127, %s128
      %p140 = scmp.eq.s32.totalorder %s24, 1
      %p141 = por %p139, %p140
      %p143 = scmp.ne.s32.totalorder %s128, %s142
      %p144 = scmp.eq.s32.totalorder %s24, 0
      %p145 = por %p143, %p144
      %s147 = sadd.s32 %s146, 1
      %p150 = scmp.eq.s32.totalorder %s18, 1
      %p151 = scmp.ne.s32.totalorder %s146, %s148
      %p152 = scmp.eq.s32.totalorder %s18, 0
      %p153 = por %p151, %p152
      %p154 = scmp.ne.s32.totalorder %s146, %s148
      %p155 = scmp.eq.s32.totalorder %s23, 1
      %p156 = por %p154, %p155
      %p157 = scmp.ne.s32.totalorder %s148, %s149
      %p158 = scmp.eq.s32.totalorder %s23, 0
      %p159 = por %p157, %p158
      %p160 = scmp.ne.s32.totalorder %s148, %s149
      %p161 = scmp.eq.s32.totalorder %s24, 1
      %p162 = por %p160, %p161
      %p164 = scmp.ne.s32.totalorder %s149, %s163
      %p165 = scmp.eq.s32.totalorder %s24, 0
      %p166 = por %p164, %p165
      %s168 = sadd.s32 %s167, 1
      %p171 = scmp.eq.s32.totalorder %s18, 1
      %p172 = scmp.ne.s32.totalorder %s167, %s169
      %p173 = scmp.eq.s32.totalorder %s18, 0
      %p174 = por %p172, %p173
      %p175 = scmp.ne.s32.totalorder %s167, %s169
      %p176 = scmp.eq.s32.totalorder %s23, 1
      %p177 = por %p175, %p176
      %p178 = scmp.ne.s32.totalorder %s169, %s170
      %p179 = scmp.eq.s32.totalorder %s23, 0
      %p180 = por %p178, %p179
      %p181 = scmp.ne.s32.totalorder %s169, %s170
      %p182 = scmp.eq.s32.totalorder %s24, 1
      %p183 = por %p181, %p182
      %p185 = scmp.ne.s32.totalorder %s170, %s184
      %p186 = scmp.eq.s32.totalorder %s24, 0
      %p187 = por %p185, %p186
      %s189 = sadd.s32 %s188, 1
      %p192 = scmp.eq.s32.totalorder %s18, 1
      %p193 = scmp.ne.s32.totalorder %s188, %s190
      %p194 = scmp.eq.s32.totalorder %s18, 0
      %p195 = por %p193, %p194
      %p196 = scmp.ne.s32.totalorder %s188, %s190
      %p197 = scmp.eq.s32.totalorder %s23, 1
      %p198 = por %p196, %p197
      %p199 = scmp.ne.s32.totalorder %s190, %s191
      %p200 = scmp.eq.s32.totalorder %s23, 0
      %p201 = por %p199, %p200
      %p202 = scmp.ne.s32.totalorder %s190, %s191
      %p203 = scmp.eq.s32.totalorder %s24, 1
      %p204 = por %p202, %p203
      %p206 = scmp.ne.s32.totalorder %s191, %s205
      %p207 = scmp.eq.s32.totalorder %s24, 0
      %p208 = por %p206, %p207
      %s210 = sadd.s32 %s209, 1
      %p213 = scmp.eq.s32.totalorder %s18, 1
      %p214 = scmp.ne.s32.totalorder %s209, %s211
      %p215 = scmp.eq.s32.totalorder %s18, 0
      %p216 = por %p214, %p215
      %p217 = scmp.ne.s32.totalorder %s209, %s211
      %p218 = scmp.eq.s32.totalorder %s23, 1
      %p219 = por %p217, %p218
      %p220 = scmp.ne.s32.totalorder %s211, %s212
      %p221 = scmp.eq.s32.totalorder %s23, 0
      %p222 = por %p220, %p221
      %p223 = scmp.ne.s32.totalorder %s211, %s212
      %p224 = scmp.eq.s32.totalorder %s24, 1
      %p225 = por %p223, %p224
      %p227 = scmp.ne.s32.totalorder %s212, %s226
      %p228 = scmp.eq.s32.totalorder %s24, 0
      %p229 = por %p227, %p228
      %s230 = ssub.s32 %s18, %s25
      %p231 = scmp.eq.s32.totalorder %s230, 0
      %s233 = sadd.s32 %s232, 1
      %s234 = scalar_select %p231, %s232, %s233
      %p237 = pneg %p231
      %p238 = scmp.eq.s32.totalorder %s18, 1
      %p239 = por %p237, %p238
      %p240 = scmp.ne.s32.totalorder %s232, %s235
      %p241 = scmp.eq.s32.totalorder %s18, 0
      %p242 = por %p240, %p241
      %p243 = scmp.ne.s32.totalorder %s232, %s235
      %p244 = scmp.eq.s32.totalorder %s23, 1
      %p245 = por %p243, %p244
      %p246 = scmp.ne.s32.totalorder %s235, %s236
      %p247 = scmp.eq.s32.totalorder %s23, 0
      %p248 = por %p246, %p247
      %p249 = scmp.ne.s32.totalorder %s235, %s236
      %p250 = scmp.eq.s32.totalorder %s24, 1
      %p251 = por %p249, %p250
      %p253 = scmp.ne.s32.totalorder %s236, %s252
      %p254 = scmp.eq.s32.totalorder %s24, 0
      %p255 = por %p253, %p254
      %p256 = scmp.le.s32.totalorder 1, %s18
      %p257 = scmp.lt.s32.totalorder %s18, 3
      %p258 = pnand %p256, %p257
      %p259 = pneg %p258
      // Predicated region
      $region9: #{tpu_custom_call.1} parent=5 // pred_check
        _
      $region10: #{tpu_custom_call.1} parent=5 // pred_check_branch
        %261 = sbr.rel (%p258) target = $region12
      $region11: #{tpu_custom_call.1} parent=5 // pred_region
        %s262 = ssub.s32 %s18, 1
        // Predicated region
        $region13: #{tpu_custom_call.1} parent=11 // pred_check
          %p263 = pneg %p117
        $region14: #{tpu_custom_call.1} parent=11 // pred_check_branch
          %265 = sbr.rel (%p263) target = $region16
        $region15: #{tpu_custom_call.1} parent=11 // pred_region
          _
        $region16: #{tpu_custom_call.1} parent=11 // pred_fallthru
          _
        // Predicated region
        $region17: #{tpu_custom_call.1} parent=11 // pred_check
          %p266 = pneg %p138
        $region18: #{tpu_custom_call.1} parent=11 // pred_check_branch
          %268 = sbr.rel (%p266) target = $region20
        $region19: #{tpu_custom_call.1} parent=11 // pred_region
          _
        $region20: #{tpu_custom_call.1} parent=11 // pred_fallthru
          _
        // Predicated region
        $region21: #{tpu_custom_call.1} parent=11 // pred_check
          %p269 = pneg %p159
        $region22: #{tpu_custom_call.1} parent=11 // pred_check_branch
          %271 = sbr.rel (%p269) target = $region24
        $region23: #{tpu_custom_call.1} parent=11 // pred_region
          _
        $region24: #{tpu_custom_call.1} parent=11 // pred_fallthru
          _
        // Predicated region
        $region25: #{tpu_custom_call.1} parent=11 // pred_check
          %p272 = pneg %p180
        $region26: #{tpu_custom_call.1} parent=11 // pred_check_branch
          %274 = sbr.rel (%p272) target = $region28
        $region27: #{tpu_custom_call.1} parent=11 // pred_region
          _
        $region28: #{tpu_custom_call.1} parent=11 // pred_fallthru
          _
        // Predicated region
        $region29: #{tpu_custom_call.1} parent=11 // pred_check
          %p275 = pneg %p201
        $region30: #{tpu_custom_call.1} parent=11 // pred_check_branch
          %277 = sbr.rel (%p275) target = $region32
        $region31: #{tpu_custom_call.1} parent=11 // pred_region
          _
        $region32: #{tpu_custom_call.1} parent=11 // pred_fallthru
          _
        // Predicated region
        $region33: #{tpu_custom_call.1} parent=11 // pred_check
          %p278 = pneg %p222
        $region34: #{tpu_custom_call.1} parent=11 // pred_check_branch
          %280 = sbr.rel (%p278) target = $region36
        $region35: #{tpu_custom_call.1} parent=11 // pred_region
          _
        $region36: #{tpu_custom_call.1} parent=11 // pred_fallthru
          _
      $region12: #{tpu_custom_call.1} parent=5 // pred_fallthru
        _
      %p281 = scmp.lt.s32.totalorder %s18, 2
      // Predicated region
      $region37: #{tpu_custom_call.1} parent=5 // pred_check
        %p282 = pneg %p281
      $region38: #{tpu_custom_call.1} parent=5 // pred_check_branch
        %284 = sbr.rel (%p282) target = $region40
      $region39: #{tpu_custom_call.1} parent=5 // pred_region
        // Predicated region
        $region41: #{tpu_custom_call.1} parent=39 // pred_check
          %p285 = pneg %p38
        $region42: #{tpu_custom_call.1} parent=39 // pred_check_branch
          %287 = sbr.rel (%p285) target = $region44
        $region43: #{tpu_custom_call.1} parent=39 // pred_region
          %p288 = scmp.lt.s32.totalorder %s18, 1
          %s289 = scalar_select %p288, %s18, 1
          %s290 = smul.addr %s289, 3
          %s291 = smul.addr %s290, 4
          %s292 = scalar_lea.vmem %s0, %s291
        $region44: #{tpu_custom_call.1} parent=39 // pred_fallthru
          _
        // Predicated region
        $region45: #{tpu_custom_call.1} parent=39 // pred_check
          %p293 = pneg %p64
        $region46: #{tpu_custom_call.1} parent=39 // pred_check_branch
          %295 = sbr.rel (%p293) target = $region48
        $region47: #{tpu_custom_call.1} parent=39 // pred_region
          %p296 = scmp.lt.s32.totalorder %s18, 1
          %s297 = scalar_select %p296, %s18, 1
          %s298 = smul.addr %s297, 3
          %s299 = smul.addr %s298, 8
          %s300 = scalar_lea.vmem %s1, %s299
        $region48: #{tpu_custom_call.1} parent=39 // pred_fallthru
          _
        // Predicated region
        $region49: #{tpu_custom_call.1} parent=39 // pred_check
          %p301 = pneg %p90
        $region50: #{tpu_custom_call.1} parent=39 // pred_check_branch
          %303 = sbr.rel (%p301) target = $region52
        $region51: #{tpu_custom_call.1} parent=39 // pred_region
          %p304 = scmp.lt.s32.totalorder %s18, 1
          %s305 = scalar_select %p304, %s18, 1
          %s306 = scalar_lea.vmem %s2, %s305
        $region52: #{tpu_custom_call.1} parent=39 // pred_fallthru
          _
      $region40: #{tpu_custom_call.1} parent=5 // pred_fallthru
        _
      %p307 = scmp.le.s32.totalorder 1, %s18
      %p308 = scmp.lt.s32.totalorder %s18, 3
      %p309 = pnand %p307, %p308
      %p310 = pneg %p309
      // Predicated region
      $region53: #{tpu_custom_call.1} parent=5 // pred_check
        _
      $region54: #{tpu_custom_call.1} parent=5 // pred_check_branch
        %312 = sbr.rel (%p309) target = $region56
      $region55: #{tpu_custom_call.1} parent=5 // pred_region
        %s313 = ssub.s32 %s18, 1
        %p314 = scmp.lt.s32.totalorder %s23, 1
        %s315 = scalar_select %p314, %s23, 1
        %s316 = smul.addr %s315, 3
        %s317 = smul.addr %s316, 4
        %s318 = scalar_lea.vmem %s0, %s317
        %p319 = pneg %p44
        %p320 = pneg %p41
        %p321 = scmp.lt.s32.totalorder %s23, 1
        %s322 = scalar_select %p321, %s23, 1
        %s323 = smul.addr %s322, 3
        %s324 = smul.addr %s323, 8
        %s325 = scalar_lea.vmem %s1, %s324
        %p326 = pneg %p70
        %p327 = pneg %p67
        %p328 = scmp.lt.s32.totalorder %s23, 1
        %s329 = scalar_select %p328, %s23, 1
        %s330 = scalar_lea.vmem %s2, %s329
        %p331 = pneg %p96
        %p332 = pneg %p93
        %p333 = pneg %p117
        %p334 = pneg %p114
        %p335 = pneg %p138
        %p336 = pneg %p135
        %p337 = pneg %p159
        %p338 = pneg %p156
        %p339 = pneg %p180
        %p340 = pneg %p177
        %p341 = pneg %p201
        %p342 = pneg %p198
        %p343 = pneg %p222
        %p344 = pneg %p219
        %p345 = pneg %p248
        %p346 = pneg %p245
        %s347 = sand.u32 %s235, 1
        %s348 = scalar_lea.sflag [#allocation3], %s347
        %s349 = sand.u32 %s235, 1
        %s350 = smul.addr %s349, 8
        %s351 = scalar_lea.vmem [#allocation2], %s350
        %p352 = scmp.lt.s32.totalorder %s23, 1
        %s353 = scalar_select %p352, %s23, 1
        %s354 = smul.addr %s353, 3
        %s355 = smul.addr %s354, 4
        %s356 = scalar_lea.vmem %s0, %s355
        %p357 = scmp.lt.s32.totalorder %s23, 1
        %s358 = scalar_select %p357, %s23, 1
        %s359 = smul.addr %s358, 3
        %s360 = smul.addr %s359, 8
        %s361 = scalar_lea.vmem %s1, %s360
        %p362 = scmp.lt.s32.totalorder %s23, 1
        %s363 = scalar_select %p362, %s23, 1
        %s364 = scalar_lea.vmem %s2, %s363
        %v366 = vld [vmem:[%s356] sm:$0xf]
        %v367 = vld [vmem:[%s356 + $0x4] sm:$0xf]
        %v368 = vld [vmem:[%s356 + $0x8] sm:$0xf]
        %v369 = vld [vmem:[%s3] sm:$0xf]
        %v370 = vld [vmem:[%s3 + $0x4] sm:$0xf]
        %v371 = vld [vmem:[%s3 + $0x8] sm:$0xf]
        %v372 = vld [vmem:[%s3 + $0xc] sm:$0xf]
        %v373 = vld [vmem:[%s3 + $0x10] sm:$0xf]
        %v374 = vld [vmem:[%s3 + $0x14] sm:$0xf]
        %v375 = vld [vmem:[%s3 + $0x18] sm:$0xf]
        %v376 = vld [vmem:[%s3 + $0x1c] sm:$0xf]
        %v377 = vld [vmem:[%s3 + $0x20] sm:$0xf]
        %v378 = vld [vmem:[%s3 + $0x24] sm:$0xf]
        %v379 = vld [vmem:[%s3 + $0x28] sm:$0xf]
        %v380 = vld [vmem:[%s3 + $0x2c] sm:$0xf]
        %v381 = vld [vmem:[%s4] sm:$0x1]
        %v383 = vperm.slane %v381, 0
        %v388 = vunpack.c.l.b16 %v366
        %v389 = vunpack.c.l.b16 %v367
        %v390 = vunpack.c.l.b16 %v368
        %v391 = vpack.c.b16 %v389, %v388
        %v392 = vpack.c.b16 %v390, %v390
        %v405 = vunpack.c.l.b16 %v369
        %v406 = vunpack.c.l.b16 %v370
        %v407 = vunpack.c.l.b16 %v371
        %v408 = vunpack.c.l.b16 %v372
        %v409 = vunpack.c.l.b16 %v373
        %v410 = vunpack.c.l.b16 %v374
        %v411 = vunpack.c.l.b16 %v375
        %v412 = vunpack.c.l.b16 %v376
        %v413 = vunpack.c.l.b16 %v377
        %v414 = vunpack.c.l.b16 %v378
        %v415 = vunpack.c.l.b16 %v379
        %v416 = vunpack.c.l.b16 %v380
        %v417 = vpack.c.b16 %v406, %v405
        %v418 = vpack.c.b16 %v408, %v407
        %v419 = vpack.c.b16 %v410, %v409
        %v420 = vpack.c.b16 %v412, %v411
        %v421 = vpack.c.b16 %v414, %v413
        %v422 = vpack.c.b16 %v416, %v415
        %vm429 = vcmask 785408
        %v431 = vsel %vm429, %v391, 0
        %v434 = vsel %vm429, %v392, 0
        %436 = vmatpush.bf16.msra.mxu0 0
        %437 = vmatpush.bf16.msra.mxu0 0
        %438 = vmatpush.bf16.msra.mxu0 %v422
        %439 = vmatpush.bf16.msra.mxu0 %v421
        %440 = vmatpush.bf16.msra.mxu0 %v420
        %441 = vmatpush.bf16.msra.mxu0 %v419
        %442 = vmatpush.bf16.msra.mxu0 %v418
        %443 = vmatpush.bf16.msra.mxu0 %v417
        %444 = vmatmul.bf16.gmra.mxu0 %v431
        %v445 = vpop.f32.mrf.mxu0
        %v446 = vadd.f32 %v383, %v445
        %v447 = vpop.f32.mrf.mxu0
        %v448 = vadd.f32 %v383, %v447
        %449 = vmatmul.bf16.gmra.mxu0 %v434
        %v450 = vpop.f32.mrf.mxu0
        %v451 = vadd.f32 %v383, %v450
        %v452 = vpop.f32.mrf.mxu0
        %453 = vdwg.mxu0
        %v454 = vmax.f32 %v446, 0.0
        %v455 = vmax.f32 %v448, 0.0
        %v456 = vmax.f32 %v451, 0.0
        %458 = vrot.lane.b32.xlu0 %v454, 96
        %v459 = vpop.permute.xlu0 %458
        %461 = vrot.lane.b32.xlu0 %v454, 64
        %v462 = vpop.permute.xlu0 %461
        %466 = vrot.lane.b32.xlu0 %v455, 96
        %v467 = vpop.permute.xlu0 %466
        %468 = vrot.lane.b32.xlu0 %v456, 96
        %v469 = vpop.permute.xlu0 %468
        %472 = vrot.lane.b32.xlu0 %v455, 64
        %v473 = vpop.permute.xlu0 %472
        %474 = vrot.lane.b32.xlu0 %v456, 64
        %v475 = vpop.permute.xlu0 %474
        %v478 = vmul.f32 %v454, %v454
        %v479 = vmul.f32 %v459, %v459
        %v480 = vmul.f32 %v462, %v462
        %vm481 = vcmask 261120
        %v482 = vsel %vm481, %v478, 0.0
        %483 = vadd.xlane.f32.xlu0 %v482
        %v484 = vpop.xlane.xlu0 %483
        %v485 = vsel %vm481, %v479, 0.0
        %486 = vadd.xlane.f32.xlu0 %v485
        %v487 = vpop.xlane.xlu0 %486
        %v488 = vsel %vm481, %v480, 0.0
        %489 = vadd.xlane.f32.xlu0 %v488
        %v490 = vpop.xlane.xlu0 %489
        %v491 = vrsqrt.pop %v484
        %v492 = vmul.f32 %v491, %v484
        %v493 = vmul.f32 %v492, %v491
        %v494 = vmul.f32 0.5, %v493
        %v495 = vsub.f32 1.5, %v494
        %v496 = vmul.f32 %v491, %v495
        %v497 = vmul.f32 %v484, %v496
        %vm498 = vcmp.eq.f32.partialorder %v484, inf
        %v499 = vsel %vm498, %v484, %v497
        %vm500 = vcmp.eq.f32.partialorder %v484, 0.0
        %v501 = vand.u32 %v484, 2147483648
        %v502 = vsel %vm500, %v501, %v499
        %v503 = vrsqrt.pop %v487
        %v504 = vmul.f32 %v503, %v487
        %v505 = vmul.f32 %v504, %v503
        %v506 = vmul.f32 0.5, %v505
        %v507 = vsub.f32 1.5, %v506
        %v508 = vmul.f32 %v503, %v507
        %v509 = vmul.f32 %v487, %v508
        %vm510 = vcmp.eq.f32.partialorder %v487, inf
        %v511 = vsel %vm510, %v487, %v509
        %vm512 = vcmp.eq.f32.partialorder %v487, 0.0
        %v513 = vand.u32 %v487, 2147483648
        %v514 = vsel %vm512, %v513, %v511
        %v515 = vrsqrt.pop %v490
        %v516 = vmul.f32 %v515, %v490
        %v517 = vmul.f32 %v516, %v515
        %v518 = vmul.f32 0.5, %v517
        %v519 = vsub.f32 1.5, %v518
        %v520 = vmul.f32 %v515, %v519
        %v521 = vmul.f32 %v490, %v520
        %vm522 = vcmp.eq.f32.partialorder %v490, inf
        %v523 = vsel %vm522, %v490, %v521
        %vm524 = vcmp.eq.f32.partialorder %v490, 0.0
        %v525 = vand.u32 %v490, 2147483648
        %v526 = vsel %vm524, %v525, %v523
        %v527 = vadd.f32 %v502, 1e-13
        %v528 = vadd.f32 %v514, 1e-13
        %v529 = vadd.f32 %v526, 1e-13
        %v530 = vrcp.pop %v527
        %v531 = vmul.f32 %v527, %v530
        %v532 = vsub.f32 1.0, %v531
        %v533 = vmul.f32 %v530, %v532
        %v534 = vadd.f32 %v530, %v533
        %vm535 = vweird.f32 %v527
        %vm536 = vweird.f32 %v530
        %vm537 = vmor %vm535, %vm536
        %v538 = vsel %vm537, %v530, %v534
        %v539 = vand.u32 2147483647, %v527
        %vm540 = vcmp.eq.f32.partialorder %v539, 8.507059e+37
        %v541 = vand.u32 %v527, 2147483648
        %v542 = vor.u32 1.1754944e-38, %v541
        %v543 = vsel %vm540, %v542, %v538
        %v544 = vmul.f32 1.0, %v543
        %v545 = vrcp.pop %v528
        %v546 = vmul.f32 %v528, %v545
        %v547 = vsub.f32 1.0, %v546
        %v548 = vmul.f32 %v545, %v547
        %v549 = vadd.f32 %v545, %v548
        %vm550 = vweird.f32 %v528
        %vm551 = vweird.f32 %v545
        %vm552 = vmor %vm550, %vm551
        %v553 = vsel %vm552, %v545, %v549
        %v554 = vand.u32 2147483647, %v528
        %vm555 = vcmp.eq.f32.partialorder %v554, 8.507059e+37
        %v556 = vand.u32 %v528, 2147483648
        %v557 = vor.u32 1.1754944e-38, %v556
        %v558 = vsel %vm555, %v557, %v553
        %v559 = vmul.f32 1.0, %v558
        %v560 = vrcp.pop %v529
        %v561 = vmul.f32 %v529, %v560
        %v562 = vsub.f32 1.0, %v561
        %v563 = vmul.f32 %v560, %v562
        %v564 = vadd.f32 %v560, %v563
        %vm565 = vweird.f32 %v529
        %vm566 = vweird.f32 %v560
        %vm567 = vmor %vm565, %vm566
        %v568 = vsel %vm567, %v560, %v564
        %v569 = vand.u32 2147483647, %v529
        %vm570 = vcmp.eq.f32.partialorder %v569, 8.507059e+37
        %v571 = vand.u32 %v529, 2147483648
        %v572 = vor.u32 1.1754944e-38, %v571
        %v573 = vsel %vm570, %v572, %v568
        %v574 = vmul.f32 1.0, %v573
        %v575 = vmul.f32 %v455, %v455
        %v576 = vmul.f32 %v456, %v456
        %v577 = vmul.f32 %v467, %v467
        %v578 = vmul.f32 %v469, %v469
        %v579 = vmul.f32 %v473, %v473
        %v580 = vmul.f32 %v475, %v475
        %v581 = vsel %vm481, %v575, 0.0
        %582 = vadd.xlane.f32.xlu0 %v581
        %v583 = vpop.xlane.xlu0 %582
        %v584 = vsel %vm481, %v576, 0.0
        %585 = vadd.xlane.f32.xlu0 %v584
        %v586 = vpop.xlane.xlu0 %585
        %v587 = vsel %vm481, %v577, 0.0
        %588 = vadd.xlane.f32.xlu0 %v587
        %v589 = vpop.xlane.xlu0 %588
        %v590 = vsel %vm481, %v578, 0.0
        %591 = vadd.xlane.f32.xlu0 %v590
        %v592 = vpop.xlane.xlu0 %591
        %v593 = vsel %vm481, %v579, 0.0
        %594 = vadd.xlane.f32.xlu0 %v593
        %v595 = vpop.xlane.xlu0 %594
        %v596 = vsel %vm481, %v580, 0.0
        %597 = vadd.xlane.f32.xlu0 %v596
        %v598 = vpop.xlane.xlu0 %597
        %v599 = vrsqrt.pop %v583
        %v600 = vmul.f32 %v599, %v583
        %v601 = vmul.f32 %v600, %v599
        %v602 = vmul.f32 0.5, %v601
        %v603 = vsub.f32 1.5, %v602
        %v604 = vmul.f32 %v599, %v603
        %v605 = vmul.f32 %v583, %v604
        %vm606 = vcmp.eq.f32.partialorder %v583, inf
        %v607 = vsel %vm606, %v583, %v605
        %vm608 = vcmp.eq.f32.partialorder %v583, 0.0
        %v609 = vand.u32 %v583, 2147483648
        %v610 = vsel %vm608, %v609, %v607
        %v611 = vrsqrt.pop %v586
        %v612 = vmul.f32 %v611, %v586
        %v613 = vmul.f32 %v612, %v611
        %v614 = vmul.f32 0.5, %v613
        %v615 = vsub.f32 1.5, %v614
        %v616 = vmul.f32 %v611, %v615
        %v617 = vmul.f32 %v586, %v616
        %vm618 = vcmp.eq.f32.partialorder %v586, inf
        %v619 = vsel %vm618, %v586, %v617
        %vm620 = vcmp.eq.f32.partialorder %v586, 0.0
        %v621 = vand.u32 %v586, 2147483648
        %v622 = vsel %vm620, %v621, %v619
        %v623 = vrsqrt.pop %v589
        %v624 = vmul.f32 %v623, %v589
        %v625 = vmul.f32 %v624, %v623
        %v626 = vmul.f32 0.5, %v625
        %v627 = vsub.f32 1.5, %v626
        %v628 = vmul.f32 %v623, %v627
        %v629 = vmul.f32 %v589, %v628
        %vm630 = vcmp.eq.f32.partialorder %v589, inf
        %v631 = vsel %vm630, %v589, %v629
        %vm632 = vcmp.eq.f32.partialorder %v589, 0.0
        %v633 = vand.u32 %v589, 2147483648
        %v634 = vsel %vm632, %v633, %v631
        %v635 = vrsqrt.pop %v592
        %v636 = vmul.f32 %v635, %v592
        %v637 = vmul.f32 %v636, %v635
        %v638 = vmul.f32 0.5, %v637
        %v639 = vsub.f32 1.5, %v638
        %v640 = vmul.f32 %v635, %v639
        %v641 = vmul.f32 %v592, %v640
        %vm642 = vcmp.eq.f32.partialorder %v592, inf
        %v643 = vsel %vm642, %v592, %v641
        %vm644 = vcmp.eq.f32.partialorder %v592, 0.0
        %v645 = vand.u32 %v592, 2147483648
        %v646 = vsel %vm644, %v645, %v643
        %v647 = vrsqrt.pop %v595
        %v648 = vmul.f32 %v647, %v595
        %v649 = vmul.f32 %v648, %v647
        %v650 = vmul.f32 0.5, %v649
        %v651 = vsub.f32 1.5, %v650
        %v652 = vmul.f32 %v647, %v651
        %v653 = vmul.f32 %v595, %v652
        %vm654 = vcmp.eq.f32.partialorder %v595, inf
        %v655 = vsel %vm654, %v595, %v653
        %vm656 = vcmp.eq.f32.partialorder %v595, 0.0
        %v657 = vand.u32 %v595, 2147483648
        %v658 = vsel %vm656, %v657, %v655
        %v659 = vrsqrt.pop %v598
        %v660 = vmul.f32 %v659, %v598
        %v661 = vmul.f32 %v660, %v659
        %v662 = vmul.f32 0.5, %v661
        %v663 = vsub.f32 1.5, %v662
        %v664 = vmul.f32 %v659, %v663
        %v665 = vmul.f32 %v598, %v664
        %vm666 = vcmp.eq.f32.partialorder %v598, inf
        %v667 = vsel %vm666, %v598, %v665
        %vm668 = vcmp.eq.f32.partialorder %v598, 0.0
        %v669 = vand.u32 %v598, 2147483648
        %v670 = vsel %vm668, %v669, %v667
        %v671 = vadd.f32 %v610, 1e-13
        %v672 = vadd.f32 %v622, 1e-13
        %v673 = vadd.f32 %v634, 1e-13
        %v674 = vadd.f32 %v646, 1e-13
        %v675 = vadd.f32 %v658, 1e-13
        %v676 = vadd.f32 %v670, 1e-13
        %v677 = vrcp.pop %v671
        %v678 = vmul.f32 %v671, %v677
        %v679 = vsub.f32 1.0, %v678
        %v680 = vmul.f32 %v677, %v679
        %v681 = vadd.f32 %v677, %v680
        %vm682 = vweird.f32 %v671
        %vm683 = vweird.f32 %v677
        %vm684 = vmor %vm682, %vm683
        %v685 = vsel %vm684, %v677, %v681
        %v686 = vand.u32 2147483647, %v671
        %vm687 = vcmp.eq.f32.partialorder %v686, 8.507059e+37
        %v688 = vand.u32 %v671, 2147483648
        %v689 = vor.u32 1.1754944e-38, %v688
        %v690 = vsel %vm687, %v689, %v685
        %v691 = vmul.f32 1.0, %v690
        %v692 = vrcp.pop %v672
        %v693 = vmul.f32 %v672, %v692
        %v694 = vsub.f32 1.0, %v693
        %v695 = vmul.f32 %v692, %v694
        %v696 = vadd.f32 %v692, %v695
        %vm697 = vweird.f32 %v672
        %vm698 = vweird.f32 %v692
        %vm699 = vmor %vm697, %vm698
        %v700 = vsel %vm699, %v692, %v696
        %v701 = vand.u32 2147483647, %v672
        %vm702 = vcmp.eq.f32.partialorder %v701, 8.507059e+37
        %v703 = vand.u32 %v672, 2147483648
        %v704 = vor.u32 1.1754944e-38, %v703
        %v705 = vsel %vm702, %v704, %v700
        %v706 = vmul.f32 1.0, %v705
        %v707 = vrcp.pop %v673
        %v708 = vmul.f32 %v673, %v707
        %v709 = vsub.f32 1.0, %v708
        %v710 = vmul.f32 %v707, %v709
        %v711 = vadd.f32 %v707, %v710
        %vm712 = vweird.f32 %v673
        %vm713 = vweird.f32 %v707
        %vm714 = vmor %vm712, %vm713
        %v715 = vsel %vm714, %v707, %v711
        %v716 = vand.u32 2147483647, %v673
        %vm717 = vcmp.eq.f32.partialorder %v716, 8.507059e+37
        %v718 = vand.u32 %v673, 2147483648
        %v719 = vor.u32 1.1754944e-38, %v718
        %v720 = vsel %vm717, %v719, %v715
        %v721 = vmul.f32 1.0, %v720
        %v722 = vrcp.pop %v674
        %v723 = vmul.f32 %v674, %v722
        %v724 = vsub.f32 1.0, %v723
        %v725 = vmul.f32 %v722, %v724
        %v726 = vadd.f32 %v722, %v725
        %vm727 = vweird.f32 %v674
        %vm728 = vweird.f32 %v722
        %vm729 = vmor %vm727, %vm728
        %v730 = vsel %vm729, %v722, %v726
        %v731 = vand.u32 2147483647, %v674
        %vm732 = vcmp.eq.f32.partialorder %v731, 8.507059e+37
        %v733 = vand.u32 %v674, 2147483648
        %v734 = vor.u32 1.1754944e-38, %v733
        %v735 = vsel %vm732, %v734, %v730
        %v736 = vmul.f32 1.0, %v735
        %v737 = vrcp.pop %v675
        %v738 = vmul.f32 %v675, %v737
        %v739 = vsub.f32 1.0, %v738
        %v740 = vmul.f32 %v737, %v739
        %v741 = vadd.f32 %v737, %v740
        %vm742 = vweird.f32 %v675
        %vm743 = vweird.f32 %v737
        %vm744 = vmor %vm742, %vm743
        %v745 = vsel %vm744, %v737, %v741
        %v746 = vand.u32 2147483647, %v675
        %vm747 = vcmp.eq.f32.partialorder %v746, 8.507059e+37
        %v748 = vand.u32 %v675, 2147483648
        %v749 = vor.u32 1.1754944e-38, %v748
        %v750 = vsel %vm747, %v749, %v745
        %v751 = vmul.f32 1.0, %v750
        %v752 = vrcp.pop %v676
        %v753 = vmul.f32 %v676, %v752
        %v754 = vsub.f32 1.0, %v753
        %v755 = vmul.f32 %v752, %v754
        %v756 = vadd.f32 %v752, %v755
        %vm757 = vweird.f32 %v676
        %vm758 = vweird.f32 %v752
        %vm759 = vmor %vm757, %vm758
        %v760 = vsel %vm759, %v752, %v756
        %v761 = vand.u32 2147483647, %v676
        %vm762 = vcmp.eq.f32.partialorder %v761, 8.507059e+37
        %v763 = vand.u32 %v676, 2147483648
        %v764 = vor.u32 1.1754944e-38, %v763
        %v765 = vsel %vm762, %v764, %v760
        %v766 = vmul.f32 1.0, %v765
        %v767 = vmul.f32 %v454, %v544
        %v768 = vmul.f32 %v459, %v559
        %v769 = vmul.f32 %v462, %v574
        %v770 = vmul.f32 %v455, %v691
        %v771 = vmul.f32 %v456, %v706
        %v772 = vmul.f32 %v467, %v721
        %v773 = vmul.f32 %v469, %v736
        %v774 = vmul.f32 %v473, %v751
        %v775 = vmul.f32 %v475, %v766
        %v777 = vsel %vm481, %v767, 0
        %v780 = vsel %vm481, %v768, 0
        %v783 = vsel %vm481, %v769, 0
        %v786 = vsel %vm481, %v770, 0
        %v789 = vsel %vm481, %v771, 0
        %v792 = vsel %vm481, %v772, 0
        %v795 = vsel %vm481, %v773, 0
        %v798 = vsel %vm481, %v774, 0
        %v801 = vsel %vm481, %v775, 0
        %803 = vmatpush.xpose.msra.mxu0 0.0
        %804 = vmatpush.xpose.msra.mxu0 0.0
        %805 = vmatpush.xpose.msra.mxu0 0.0
        %806 = vmatpush.xpose.msra.mxu0 0.0
        %807 = vmatpush.xpose.msra.mxu0 0.0
        %808 = vmatpush.xpose.msra.mxu0 0.0
        %809 = vmatpush.xpose.msra.mxu0 0.0
        %810 = vmatpush.xpose.msra.mxu0 0.0
        %811 = vmatpush.xpose.msra.mxu0 0.0
        %812 = vmatpush.xpose.msra.mxu0 0.0
        %813 = vmatpush.xpose.msra.mxu0 %v801
        %814 = vmatpush.xpose.msra.mxu0 %v798
        %815 = vmatpush.xpose.msra.mxu0 %v795
        %816 = vmatpush.xpose.msra.mxu0 %v792
        %817 = vmatpush.xpose.msra.mxu0 %v789
        %818 = vmatpush.xpose.msra.mxu0 %v786
        %819 = vmatmul.f32.gmra.mxu0 %v777
        %v820 = vpop.f32.mrf.mxu0
        %v821 = vadd.f32 0.0, %v820
        %822 = vmatmul.f32.gmra.mxu0 %v780
        %v823 = vpop.f32.mrf.mxu0
        %v824 = vadd.f32 0.0, %v823
        %825 = vmatmul.f32.gmra.mxu0 %v783
        %v826 = vpop.f32.mrf.mxu0
        %v827 = vadd.f32 0.0, %v826
        %828 = vdwg.mxu0
        %v829 = vld [vmem:[%s364] sm:$0x1]
        %vm830 = vcmp.gt.f32.partialorder %v829, 0.0
        %v831 = vsel %vm830, 1, 0
        %v832 = vperm.slane %v831, 0
        %vm833 = vcmp.eq.s32.totalorder %v832, 1
        %v834 = vsel %vm833, %v821, -10000.0
        %v835 = vsel %vm833, %v824, -10000.0
        %v836 = vsel %vm833, %v827, -10000.0
        %840 = vrot.lane.b32.xlu0 %v834, 48
        %v841 = vpop.permute.xlu0 %840
        %842 = vrot.lane.b32.xlu0 %v835, 48
        %v843 = vpop.permute.xlu0 %842
        %844 = vrot.lane.b32.xlu0 %v836, 48
        %v845 = vpop.permute.xlu0 %844
        %849 = vrot.lane.b32.xlu0 %v834, 96
        %v850 = vpop.permute.xlu0 %849
        %851 = vrot.lane.b32.xlu0 %v835, 96
        %v852 = vpop.permute.xlu0 %851
        %853 = vrot.lane.b32.xlu0 %v836, 96
        %v854 = vpop.permute.xlu0 %853
        %858 = vrot.lane.b32.xlu0 %v834, 16
        %v859 = vpop.permute.xlu0 %858
        %860 = vrot.lane.b32.xlu0 %v835, 16
        %v861 = vpop.permute.xlu0 %860
        %862 = vrot.lane.b32.xlu0 %v836, 16
        %v863 = vpop.permute.xlu0 %862
        %867 = vrot.lane.b32.xlu0 %v834, 64
        %v868 = vpop.permute.xlu0 %867
        %869 = vrot.lane.b32.xlu0 %v835, 64
        %v870 = vpop.permute.xlu0 %869
        %871 = vrot.lane.b32.xlu0 %v836, 64
        %v872 = vpop.permute.xlu0 %871
        %876 = vrot.lane.b32.xlu0 %v834, 112
        %v877 = vpop.permute.xlu0 %876
        %878 = vrot.lane.b32.xlu0 %v835, 112
        %v879 = vpop.permute.xlu0 %878
        %880 = vrot.lane.b32.xlu0 %v836, 112
        %v881 = vpop.permute.xlu0 %880
        %885 = vrot.lane.b32.xlu0 %v834, 32
        %v886 = vpop.permute.xlu0 %885
        %887 = vrot.lane.b32.xlu0 %v835, 32
        %v888 = vpop.permute.xlu0 %887
        %889 = vrot.lane.b32.xlu0 %v836, 32
        %v890 = vpop.permute.xlu0 %889
        %894 = vrot.lane.b32.xlu0 %v834, 80
        %v895 = vpop.permute.xlu0 %894
        %896 = vrot.lane.b32.xlu0 %v835, 80
        %v897 = vpop.permute.xlu0 %896
        %898 = vrot.lane.b32.xlu0 %v836, 80
        %v899 = vpop.permute.xlu0 %898
        %vm903 = vcmask 392192
        %v904 = vsel %vm903, %v834, %v841
        %v905 = vsel %vm903, %v835, %v843
        %v906 = vsel %vm903, %v836, %v845
        %v907 = vsel %vm429, %v904, %v850
        %v908 = vsel %vm429, %v905, %v852
        %v909 = vsel %vm429, %v906, %v854
        %vm910 = vcmask 130048
        %v911 = vsel %vm910, %v850, %v859
        %v912 = vsel %vm910, %v852, %v861
        %v913 = vsel %vm910, %v854, %v863
        %vm914 = vcmask 523264
        %v915 = vsel %vm914, %v911, %v868
        %v916 = vsel %vm914, %v912, %v870
        %v917 = vsel %vm914, %v913, %v872
        %vm918 = vcmask 916480
        %v919 = vsel %vm918, %v915, %v877
        %v920 = vsel %vm918, %v916, %v879
        %v921 = vsel %vm918, %v917, %v881
        %v922 = vsel %vm481, %v877, %v886
        %v923 = vsel %vm481, %v879, %v888
        %v924 = vsel %vm481, %v881, %v890
        %vm925 = vcmask 654336
        %v926 = vsel %vm925, %v922, %v895
        %v927 = vsel %vm925, %v923, %v897
        %v928 = vsel %vm925, %v924, %v899
        %v929 = vld [vmem:[%s5] sm:$0x1f]
        %v931 = vperm.slane %v929, 0
        %v932 = vperm.slane %v929, 1
        %v933 = vperm.slane %v929, 2
        %v934 = vperm.slane %v929, 3
        %v935 = vperm.slane %v929, 4
        %v941 = vsub.f32 %v907, %v931
        %v942 = vsub.f32 %v919, %v932
        %v943 = vsub.f32 %v926, %v933
        %v944 = vsub.f32 %v907, %v934
        %v945 = vsub.f32 %v850, %v935
        %v946 = vsub.f32 %v908, %v931
        %v947 = vsub.f32 %v920, %v932
        %v948 = vsub.f32 %v927, %v933
        %v949 = vsub.f32 %v908, %v934
        %v950 = vsub.f32 %v852, %v935
        %v951 = vsub.f32 %v909, %v931
        %v952 = vsub.f32 %v921, %v932
        %v953 = vsub.f32 %v928, %v933
        %v954 = vsub.f32 %v909, %v934
        %v955 = vsub.f32 %v854, %v935
        %v956 = vmul.f32 %v941, %v941
        %v957 = vmul.f32 %v942, %v942
        %v958 = vmul.f32 %v943, %v943
        %v959 = vmul.f32 %v944, %v944
        %v960 = vmul.f32 %v945, %v945
        %v961 = vmul.f32 %v946, %v946
        %v962 = vmul.f32 %v947, %v947
        %v963 = vmul.f32 %v948, %v948
        %v964 = vmul.f32 %v949, %v949
        %v965 = vmul.f32 %v950, %v950
        %v966 = vmul.f32 %v951, %v951
        %v967 = vmul.f32 %v952, %v952
        %v968 = vmul.f32 %v953, %v953
        %v969 = vmul.f32 %v954, %v954
        %v970 = vmul.f32 %v955, %v955
        %v971 = vld [vmem:[%s6] sm:$0x1f]
        %v973 = vperm.slane %v971, 0
        %v974 = vperm.slane %v971, 1
        %v975 = vperm.slane %v971, 2
        %v976 = vperm.slane %v971, 3
        %v977 = vperm.slane %v971, 4
        %v983 = vmul.f32 %v956, %v973
        %v984 = vmul.f32 %v957, %v974
        %v985 = vmul.f32 %v958, %v975
        %v986 = vmul.f32 %v959, %v976
        %v987 = vmul.f32 %v960, %v977
        %v988 = vmul.f32 %v961, %v973
        %v989 = vmul.f32 %v962, %v974
        %v990 = vmul.f32 %v963, %v975
        %v991 = vmul.f32 %v964, %v976
        %v992 = vmul.f32 %v965, %v977
        %v993 = vmul.f32 %v966, %v973
        %v994 = vmul.f32 %v967, %v974
        %v995 = vmul.f32 %v968, %v975
        %v996 = vmul.f32 %v969, %v976
        %v997 = vmul.f32 %v970, %v977
        %v998 = vmul.f32 %v983, 1.442695
        %v999 = vpow.pop %v998
        %v1000 = vmul.f32 %v984, 1.442695
        %v1001 = vpow.pop %v1000
        %v1002 = vmul.f32 %v985, 1.442695
        %v1003 = vpow.pop %v1002
        %v1004 = vmul.f32 %v986, 1.442695
        %v1005 = vpow.pop %v1004
        %v1006 = vmul.f32 %v987, 1.442695
        %v1007 = vpow.pop %v1006
        %v1008 = vmul.f32 %v988, 1.442695
        %v1009 = vpow.pop %v1008
        %v1010 = vmul.f32 %v989, 1.442695
        %v1011 = vpow.pop %v1010
        %v1012 = vmul.f32 %v990, 1.442695
        %v1013 = vpow.pop %v1012
        %v1014 = vmul.f32 %v991, 1.442695
        %v1015 = vpow.pop %v1014
        %v1016 = vmul.f32 %v992, 1.442695
        %v1017 = vpow.pop %v1016
        %v1018 = vmul.f32 %v993, 1.442695
        %v1019 = vpow.pop %v1018
        %v1020 = vmul.f32 %v994, 1.442695
        %v1021 = vpow.pop %v1020
        %v1022 = vmul.f32 %v995, 1.442695
        %v1023 = vpow.pop %v1022
        %v1024 = vmul.f32 %v996, 1.442695
        %v1025 = vpow.pop %v1024
        %v1026 = vmul.f32 %v997, 1.442695
        %v1027 = vpow.pop %v1026
        %v1028 = vpack.c.bf16 %v1009, %v999
        %v1029 = vpack.c.bf16 %v1011, %v1001
        %v1030 = vpack.c.bf16 %v1013, %v1003
        %v1031 = vpack.c.bf16 %v1015, %v1005
        %v1032 = vpack.c.bf16 %v1017, %v1007
        %v1033 = vpack.c.bf16 %v1019, %v1019
        %v1034 = vpack.c.bf16 %v1021, %v1021
        %v1035 = vpack.c.bf16 %v1023, %v1023
        %v1036 = vpack.c.bf16 %v1025, %v1025
        %v1037 = vpack.c.bf16 %v1027, %v1027
        %v1038 = vld [vmem:[%s7] sm:$0xf]
        %v1039 = vld [vmem:[%s7 + $0x4] sm:$0xf]
        %v1040 = vld [vmem:[%s7 + $0x8] sm:$0xf]
        %v1041 = vld [vmem:[%s7 + $0xc] sm:$0xf]
        %v1042 = vld [vmem:[%s7 + $0x10] sm:$0xf]
        %v1043 = vld [vmem:[%s7 + $0x14] sm:$0xf]
        %v1044 = vld [vmem:[%s7 + $0x18] sm:$0xf]
        %v1045 = vld [vmem:[%s7 + $0x1c] sm:$0xf]
        %v1046 = vld [vmem:[%s7 + $0x20] sm:$0xf]
        %v1047 = vld [vmem:[%s7 + $0x24] sm:$0xf]
        %v1048 = vld [vmem:[%s7 + $0x28] sm:$0xf]
        %v1049 = vld [vmem:[%s7 + $0x2c] sm:$0xf]
        %v1050 = vld [vmem:[%s7 + $0x30] sm:$0xf]
        %v1051 = vld [vmem:[%s7 + $0x34] sm:$0xf]
        %v1052 = vld [vmem:[%s7 + $0x38] sm:$0xf]
        %v1053 = vld [vmem:[%s7 + $0x3c] sm:$0xf]
        %v1054 = vld [vmem:[%s7 + $0x40] sm:$0xf]
        %v1055 = vld [vmem:[%s7 + $0x44] sm:$0xf]
        %v1056 = vld [vmem:[%s7 + $0x48] sm:$0xf]
        %v1057 = vld [vmem:[%s7 + $0x4c] sm:$0xf]
        %v1058 = vld [vmem:[%s7 + $0x50] sm:$0xf]
        %v1059 = vld [vmem:[%s7 + $0x54] sm:$0xf]
        %v1060 = vld [vmem:[%s7 + $0x58] sm:$0xf]
        %v1061 = vld [vmem:[%s7 + $0x5c] sm:$0xf]
        %v1062 = vld [vmem:[%s7 + $0x60] sm:$0xf]
        %v1063 = vld [vmem:[%s7 + $0x64] sm:$0xf]
        %v1064 = vld [vmem:[%s7 + $0x68] sm:$0xf]
        %v1065 = vld [vmem:[%s7 + $0x6c] sm:$0xf]
        %v1066 = vld [vmem:[%s7 + $0x70] sm:$0xf]
        %v1067 = vld [vmem:[%s7 + $0x74] sm:$0xf]
        %v1068 = vld [vmem:[%s7 + $0x78] sm:$0xf]
        %v1069 = vld [vmem:[%s7 + $0x7c] sm:$0xf]
        %v1070 = vld [vmem:[%s7 + $0x80] sm:$0xf]
        %v1071 = vld [vmem:[%s7 + $0x84] sm:$0xf]
        %v1072 = vld [vmem:[%s7 + $0x88] sm:$0xf]
        %v1073 = vld [vmem:[%s7 + $0x8c] sm:$0xf]
        %v1074 = vld [vmem:[%s7 + $0x90] sm:$0xf]
        %v1075 = vld [vmem:[%s7 + $0x94] sm:$0xf]
        %v1076 = vld [vmem:[%s7 + $0x98] sm:$0xf]
        %v1077 = vld [vmem:[%s7 + $0x9c] sm:$0xf]
        %v1078 = vld [vmem:[%s7 + $0xa0] sm:$0xf]
        %v1079 = vld [vmem:[%s7 + $0xa4] sm:$0xf]
        %v1080 = vld [vmem:[%s7 + $0xa8] sm:$0xf]
        %v1081 = vld [vmem:[%s7 + $0xac] sm:$0xf]
        %v1082 = vld [vmem:[%s7 + $0xb0] sm:$0xf]
        %v1083 = vld [vmem:[%s7 + $0xb4] sm:$0xf]
        %v1084 = vld [vmem:[%s7 + $0xb8] sm:$0xf]
        %v1085 = vld [vmem:[%s7 + $0xbc] sm:$0xf]
        %v1086 = vld [vmem:[%s7 + $0xc0] sm:$0xf]
        %v1087 = vld [vmem:[%s7 + $0xc4] sm:$0xf]
        %v1088 = vld [vmem:[%s7 + $0xc8] sm:$0xf]
        %v1089 = vld [vmem:[%s7 + $0xcc] sm:$0xf]
        %v1090 = vld [vmem:[%s7 + $0xd0] sm:$0xf]
        %v1091 = vld [vmem:[%s7 + $0xd4] sm:$0xf]
        %v1092 = vld [vmem:[%s7 + $0xd8] sm:$0xf]
        %v1093 = vld [vmem:[%s7 + $0xdc] sm:$0xf]
        %v1094 = vld [vmem:[%s7 + $0xe0] sm:$0xf]
        %v1095 = vld [vmem:[%s7 + $0xe4] sm:$0xf]
        %v1096 = vld [vmem:[%s7 + $0xe8] sm:$0xf]
        %v1097 = vld [vmem:[%s7 + $0xec] sm:$0xf]
        %v1098 = vld [vmem:[%s7 + $0xf0] sm:$0xf]
        %v1099 = vld [vmem:[%s7 + $0xf4] sm:$0xf]
        %v1100 = vld [vmem:[%s7 + $0xf8] sm:$0xf]
        %v1101 = vld [vmem:[%s7 + $0xfc] sm:$0xf]
        %v1102 = vld [vmem:[%s7 + $0x100] sm:$0xf]
        %v1103 = vld [vmem:[%s7 + $0x104] sm:$0xf]
        %v1170 = vunpack.c.l.b16 %v1038
        %v1171 = vunpack.c.l.b16 %v1039
        %v1172 = vunpack.c.l.b16 %v1040
        %v1173 = vunpack.c.l.b16 %v1041
        %v1174 = vunpack.c.l.b16 %v1042
        %v1175 = vunpack.c.l.b16 %v1043
        %v1176 = vunpack.c.l.b16 %v1044
        %v1177 = vunpack.c.l.b16 %v1045
        %v1178 = vunpack.c.l.b16 %v1046
        %v1179 = vunpack.c.l.b16 %v1047
        %v1180 = vunpack.c.l.b16 %v1048
        %v1181 = vunpack.c.l.b16 %v1049
        %v1182 = vunpack.c.l.b16 %v1050
        %v1183 = vunpack.c.l.b16 %v1051
        %v1184 = vunpack.c.l.b16 %v1052
        %v1185 = vunpack.c.l.b16 %v1053
        %v1186 = vunpack.c.l.b16 %v1054
        %v1187 = vunpack.c.l.b16 %v1055
        %v1188 = vunpack.c.l.b16 %v1056
        %v1189 = vunpack.c.l.b16 %v1057
        %v1190 = vunpack.c.l.b16 %v1058
        %v1191 = vunpack.c.l.b16 %v1059
        %v1192 = vunpack.c.l.b16 %v1060
        %v1193 = vunpack.c.l.b16 %v1061
        %v1194 = vunpack.c.l.b16 %v1062
        %v1195 = vunpack.c.l.b16 %v1063
        %v1196 = vunpack.c.l.b16 %v1064
        %v1197 = vunpack.c.l.b16 %v1065
        %v1198 = vunpack.c.l.b16 %v1066
        %v1199 = vunpack.c.l.b16 %v1067
        %v1200 = vunpack.c.l.b16 %v1068
        %v1201 = vunpack.c.l.b16 %v1069
        %v1202 = vunpack.c.l.b16 %v1070
        %v1203 = vunpack.c.l.b16 %v1071
        %v1204 = vunpack.c.l.b16 %v1072
        %v1205 = vunpack.c.l.b16 %v1073
        %v1206 = vunpack.c.l.b16 %v1074
        %v1207 = vunpack.c.l.b16 %v1075
        %v1208 = vunpack.c.l.b16 %v1076
        %v1209 = vunpack.c.l.b16 %v1077
        %v1210 = vunpack.c.l.b16 %v1078
        %v1211 = vunpack.c.l.b16 %v1079
        %v1212 = vunpack.c.l.b16 %v1080
        %v1213 = vunpack.c.l.b16 %v1081
        %v1214 = vunpack.c.l.b16 %v1082
        %v1215 = vunpack.c.l.b16 %v1083
        %v1216 = vunpack.c.l.b16 %v1084
        %v1217 = vunpack.c.l.b16 %v1085
        %v1218 = vunpack.c.l.b16 %v1086
        %v1219 = vunpack.c.l.b16 %v1087
        %v1220 = vunpack.c.l.b16 %v1088
        %v1221 = vunpack.c.l.b16 %v1089
        %v1222 = vunpack.c.l.b16 %v1090
        %v1223 = vunpack.c.l.b16 %v1091
        %v1224 = vunpack.c.l.b16 %v1092
        %v1225 = vunpack.c.l.b16 %v1093
        %v1226 = vunpack.c.l.b16 %v1094
        %v1227 = vunpack.c.l.b16 %v1095
        %v1228 = vunpack.c.l.b16 %v1096
        %v1229 = vunpack.c.l.b16 %v1097
        %v1230 = vunpack.c.l.b16 %v1098
        %v1231 = vunpack.c.l.b16 %v1099
        %v1232 = vunpack.c.l.b16 %v1100
        %v1233 = vunpack.c.l.b16 %v1101
        %v1234 = vunpack.c.l.b16 %v1102
        %v1235 = vunpack.c.l.b16 %v1103
        %v1236 = vpack.c.b16 %v1171, %v1170
        %v1237 = vpack.c.b16 %v1173, %v1172
        %v1238 = vpack.c.b16 %v1175, %v1174
        %v1239 = vpack.c.b16 %v1177, %v1176
        %v1240 = vpack.c.b16 %v1179, %v1178
        %v1241 = vpack.c.b16 %v1181, %v1180
        %v1242 = vpack.c.b16 %v1183, %v1182
        %v1243 = vpack.c.b16 %v1185, %v1184
        %v1244 = vpack.c.b16 %v1187, %v1186
        %v1245 = vpack.c.b16 %v1189, %v1188
        %v1246 = vpack.c.b16 %v1191, %v1190
        %v1247 = vpack.c.b16 %v1193, %v1192
        %v1248 = vpack.c.b16 %v1195, %v1194
        %v1249 = vpack.c.b16 %v1197, %v1196
        %v1250 = vpack.c.b16 %v1199, %v1198
        %v1251 = vpack.c.b16 %v1201, %v1200
        %v1252 = vpack.c.b16 %v1203, %v1202
        %v1253 = vpack.c.b16 %v1205, %v1204
        %v1254 = vpack.c.b16 %v1207, %v1206
        %v1255 = vpack.c.b16 %v1209, %v1208
        %v1256 = vpack.c.b16 %v1211, %v1210
        %v1257 = vpack.c.b16 %v1213, %v1212
        %v1258 = vpack.c.b16 %v1215, %v1214
        %v1259 = vpack.c.b16 %v1217, %v1216
        %v1260 = vpack.c.b16 %v1219, %v1218
        %v1261 = vpack.c.b16 %v1221, %v1220
        %v1262 = vpack.c.b16 %v1223, %v1222
        %v1263 = vpack.c.b16 %v1225, %v1224
        %v1264 = vpack.c.b16 %v1227, %v1226
        %v1265 = vpack.c.b16 %v1229, %v1228
        %v1266 = vpack.c.b16 %v1231, %v1230
        %v1267 = vpack.c.b16 %v1233, %v1232
        %v1268 = vpack.c.b16 %v1235, %v1234
        %v1303 = vsel %vm910, %v1032, 0
        %v1306 = vsel %vm910, %v1037, 0
        %1308 = vmatpush.bf16.msra.mxu0 %v1243
        %1309 = vmatpush.bf16.msra.mxu0 %v1242
        %1310 = vmatpush.bf16.msra.mxu0 %v1241
        %1311 = vmatpush.bf16.msra.mxu0 %v1240
        %1312 = vmatpush.bf16.msra.mxu0 %v1239
        %1313 = vmatpush.bf16.msra.mxu0 %v1238
        %1314 = vmatpush.bf16.msra.mxu0 %v1237
        %1315 = vmatpush.bf16.msra.mxu0 %v1236
        %1316 = vmatmul.bf16.gmra.mxu0 %v1028
        %v1317 = vpop.f32.mrf.mxu0
        %v1318 = vadd.f32 0.0, %v1317
        %v1319 = vpop.f32.mrf.mxu0
        %v1320 = vadd.f32 0.0, %v1319
        %1321 = vmatmul.bf16.gmra.mxu0 %v1033
        %v1322 = vpop.f32.mrf.mxu0
        %v1323 = vadd.f32 0.0, %v1322
        %v1324 = vpop.f32.mrf.mxu0
        %1325 = vdwg.mxu0
        %1326 = vmatpush.bf16.msra.mxu0 %v1251
        %1327 = vmatpush.bf16.msra.mxu0 %v1250
        %1328 = vmatpush.bf16.msra.mxu0 %v1249
        %1329 = vmatpush.bf16.msra.mxu0 %v1248
        %1330 = vmatpush.bf16.msra.mxu0 %v1247
        %1331 = vmatpush.bf16.msra.mxu0 %v1246
        %1332 = vmatpush.bf16.msra.mxu0 %v1245
        %1333 = vmatpush.bf16.msra.mxu0 %v1244
        %1334 = vmatmul.bf16.gmra.mxu0 %v1029
        %v1335 = vpop.f32.mrf.mxu0
        %v1336 = vadd.f32 %v1318, %v1335
        %v1337 = vpop.f32.mrf.mxu0
        %v1338 = vadd.f32 %v1320, %v1337
        %1339 = vmatmul.bf16.gmra.mxu0 %v1034
        %v1340 = vpop.f32.mrf.mxu0
        %v1341 = vadd.f32 %v1323, %v1340
        %v1342 = vpop.f32.mrf.mxu0
        %1343 = vdwg.mxu0
        %1344 = vmatpush.bf16.msra.mxu0 %v1259
        %1345 = vmatpush.bf16.msra.mxu0 %v1258
        %1346 = vmatpush.bf16.msra.mxu0 %v1257
        %1347 = vmatpush.bf16.msra.mxu0 %v1256
        %1348 = vmatpush.bf16.msra.mxu0 %v1255
        %1349 = vmatpush.bf16.msra.mxu0 %v1254
        %1350 = vmatpush.bf16.msra.mxu0 %v1253
        %1351 = vmatpush.bf16.msra.mxu0 %v1252
        %1352 = vmatmul.bf16.gmra.mxu0 %v1030
        %v1353 = vpop.f32.mrf.mxu0
        %v1354 = vadd.f32 %v1336, %v1353
        %v1355 = vpop.f32.mrf.mxu0
        %v1356 = vadd.f32 %v1338, %v1355
        %1357 = vmatmul.bf16.gmra.mxu0 %v1035
        %v1358 = vpop.f32.mrf.mxu0
        %v1359 = vadd.f32 %v1341, %v1358
        %v1360 = vpop.f32.mrf.mxu0
        %1361 = vdwg.mxu0
        %1362 = vmatpush.bf16.msra.mxu0 %v1267
        %1363 = vmatpush.bf16.msra.mxu0 %v1266
        %1364 = vmatpush.bf16.msra.mxu0 %v1265
        %1365 = vmatpush.bf16.msra.mxu0 %v1264
        %1366 = vmatpush.bf16.msra.mxu0 %v1263
        %1367 = vmatpush.bf16.msra.mxu0 %v1262
        %1368 = vmatpush.bf16.msra.mxu0 %v1261
        %1369 = vmatpush.bf16.msra.mxu0 %v1260
        %1370 = vmatmul.bf16.gmra.mxu0 %v1031
        %v1371 = vpop.f32.mrf.mxu0
        %v1372 = vadd.f32 %v1354, %v1371
        %v1373 = vpop.f32.mrf.mxu0
        %v1374 = vadd.f32 %v1356, %v1373
        %1375 = vmatmul.bf16.gmra.mxu0 %v1036
        %v1376 = vpop.f32.mrf.mxu0
        %v1377 = vadd.f32 %v1359, %v1376
        %v1378 = vpop.f32.mrf.mxu0
        %1379 = vdwg.mxu0
        %1380 = vmatpush.bf16.msra.mxu0 0
        %1381 = vmatpush.bf16.msra.mxu0 0
        %1382 = vmatpush.bf16.msra.mxu0 0
        %1383 = vmatpush.bf16.msra.mxu0 0
        %1384 = vmatpush.bf16.msra.mxu0 0
        %1385 = vmatpush.bf16.msra.mxu0 0
        %1386 = vmatpush.bf16.msra.mxu0 0
        %1387 = vmatpush.bf16.msra.mxu0 %v1268
        %1388 = vmatmul.bf16.gmra.mxu0 %v1303
        %v1389 = vpop.f32.mrf.mxu0
        %v1390 = vadd.f32 %v1372, %v1389
        %v1391 = vpop.f32.mrf.mxu0
        %v1392 = vadd.f32 %v1374, %v1391
        %1393 = vmatmul.bf16.gmra.mxu0 %v1306
        %v1394 = vpop.f32.mrf.mxu0
        %v1395 = vadd.f32 %v1377, %v1394
        %v1396 = vpop.f32.mrf.mxu0
        %1397 = vdwg.mxu0
        %v1398 = vmax.f32 %v1390, 1e-10
        %v1399 = vmax.f32 %v1392, 1e-10
        %v1400 = vmax.f32 %v1395, 1e-10
        %v1401 = vlog2.pop %v1398
        %v1402 = vmul.f32 %v1401, 0.6931472
        %v1403 = vlog2.pop %v1399
        %v1404 = vmul.f32 %v1403, 0.6931472
        %v1405 = vlog2.pop %v1400
        %v1406 = vmul.f32 %v1405, 0.6931472
        %v1407 = vld [vmem:[%s361] sm:$0xff]
        %v1408 = vld [vmem:[%s361 + $0x8] sm:$0xff]
        %v1409 = vld [vmem:[%s361 + $0x10] sm:$0xff]
        %1411 = vset.pattern.permute.xlu0 0
        %1412 = vperm.xlu0 %1411, %v1407
        %v1413 = vpop.permute.xlu0 %1412
        %1416 = vset.pattern.permute.xlu0 0
        %1417 = vperm.xlu0 %1416, %v1408
        %v1418 = vpop.permute.xlu0 %1417
        %1421 = vset.pattern.permute.xlu0 0
        %1422 = vperm.xlu0 %1421, %v1409
        %v1423 = vpop.permute.xlu0 %1422
        %v1425 = vmul.f32 %v1402, %v1413
        %v1426 = vmul.f32 %v1404, %v1418
        %v1427 = vmul.f32 %v1406, %v1423
        %v1428 = vld [vmem:[%s8] sm:$0xff]
        %v1429 = vld [vmem:[%s8 + $0x8] sm:$0xff]
        %v1430 = vld [vmem:[%s8 + $0x10] sm:$0xff]
        %v1431 = vmul.f32 %v1425, %v1428
        %v1432 = vmul.f32 %v1426, %v1429
        %v1433 = vmul.f32 %v1427, %v1430
        %vm1434 = vcmask 269312
        %v1435 = vsel %vm1434, %v1431, 0.0
        %1436 = vadd.xlane.f32.xlu0 %v1435
        %v1437 = vpop.xlane.xlu0 %1436
        %v1438 = vsel %vm1434, %v1432, 0.0
        %1439 = vadd.xlane.f32.xlu0 %v1438
        %v1440 = vpop.xlane.xlu0 %1439
        %v1441 = vsel %vm1434, %v1433, 0.0
        %1442 = vadd.xlane.f32.xlu0 %v1441
        %v1443 = vpop.xlane.xlu0 %1442
        %v1444 = vadd.f32 %v1437, %v1440
        %v1445 = vadd.f32 %v1444, %v1443
        %v1446 = vrot.slane %v1445, 4
        %v1447 = vadd.f32 %v1445, %v1446
        %v1448 = vrot.slane %v1447, 2
        %v1449 = vadd.f32 %v1447, %v1448
        %v1450 = vrot.slane %v1449, 1
        %v1451 = vadd.f32 %v1449, %v1450
        %1452 = vst [vmem:[%s351] sm:$0xff] %v1451
        %s1453 = sand.u32 %s235, 1
        %s1454 = scalar_lea.sflag [#allocation3], %s1453
        %s1455 = sand.u32 %s235, 1
        %s1456 = smul.addr %s1455, 8
        %s1457 = scalar_lea.vmem [#allocation2], %s1456
        // Predicated region
        $region57: #{tpu_custom_call.1} parent=55 // pred_check
          %p1458 = pneg %p245
        $region58: #{tpu_custom_call.1} parent=55 // pred_check_branch
          %1460 = sbr.rel (%p1458) target = $region60
        $region59: #{tpu_custom_call.1} parent=55 // pred_region
          %1462 = vsyncadd %s1454, 0
          %s1463 = smul.addr %s23, 8
          %s1464 = scalar_lea.hbm %s9, %s1463
          %s1466 = sshll.u32 %s1457, 4
          %s1467 = int_to_ptr.vmem [resolvable:$true] %s1466
          %s1468 = sshll.u32 %s1464, 4
          %s1469 = int_to_ptr.hbm [resolvable:$true] %s1468
          %1471 = dma.vmem_to_hbm [thread:$0]  %s1467, 128, %s1469, %s1454
        $region60: #{tpu_custom_call.1} parent=55 // pred_fallthru
          _
      $region56: #{tpu_custom_call.1} parent=5 // pred_fallthru
        _
      %p1472 = scmp.le.s32.totalorder 2, %s18
      // Predicated region
      $region61: #{tpu_custom_call.1} parent=5 // pred_check
        %p1473 = pneg %p1472
      $region62: #{tpu_custom_call.1} parent=5 // pred_check_branch
        %1475 = sbr.rel (%p1473) target = $region64
      $region63: #{tpu_custom_call.1} parent=5 // pred_region
        %s1476 = ssub.s32 %s18, 2
        // Predicated region
        $region65: #{tpu_custom_call.1} parent=63 // pred_check
          %p1477 = pneg %p251
        $region66: #{tpu_custom_call.1} parent=63 // pred_check_branch
          %1479 = sbr.rel (%p1477) target = $region68
        $region67: #{tpu_custom_call.1} parent=63 // pred_region
          %s1480 = sand.u32 %s236, 1
          %s1481 = scalar_lea.sflag [#allocation3], %s1480
          %s1482 = sand.u32 %s236, 1
          %s1483 = smul.addr %s1482, 8
          %s1484 = scalar_lea.vmem [#allocation2], %s1483
          %1486 = dma.done %s1481, 128
        $region68: #{tpu_custom_call.1} parent=63 // pred_fallthru
          _
      $region64: #{tpu_custom_call.1} parent=5 // pred_fallthru
        _
    $region6: #{tpu_custom_call.1} parent=1 // loop_footer
      %s22 = sadd.s32 1, %s18
    $region7: #{tpu_custom_call.1} parent=1 // loop_footer_branch
      %17 = sbr.rel target = $region3
    $region8: #{tpu_custom_call.1} parent=1 // loop_exit
      _
    %1487 = vsyncpa [#allocation3], 1
    %s1488 = scalar_lea.sflag [#allocation3], 1
    %1489 = vsyncpa %s1488, 1

</llo_original>
